<compile_context>
chip_gen: v5e
topology: v5e:2x2
jax: 0.10.0
libtpu: 0.0.40
codegen_flags: <defaults>
</compile_context>

<pallas_src>
import functools

import jax
import jax.numpy as jnp
from jax.experimental import pallas as pl
from jax.experimental.pallas import tpu as pltpu

# ---------------- configuration (small, consistent with the module) ----------
IN_CHANNELS = 3
INPUT_SIZE = (16, 16)
PATCH_SIZE = (8, 8)
FEATURE_DIM = 32
NUM_HEADS = 4
NUM_LAYERS = 2
MLP_FACTOR = 4.0
LN_EPS = 1e-5
L_PAD = 8          # tokens per sample padded to one full sublane group


# ---------------------------- Pallas kernel ----------------------------------
def _layernorm(v, g, b):
    # torch.nn.LayerNorm semantics: biased variance, eps inside rsqrt, fp32.
    mu = jnp.mean(v, axis=-1, keepdims=True)
    var = jnp.mean((v - mu) ** 2, axis=-1, keepdims=True)
    return (v - mu) * jax.lax.rsqrt(var + LN_EPS) * g + b


def _vit_kernel(patches_ref, proj_w_ref, cls_pos_ref, key_mask_ref, ln_ref,
                w_qkvo_ref, w_o_ref, w1_ref, w2_ref,
                b_qkvo_ref, b_o_ref, b1_ref, b2_ref,
                o_ref, *, num_heads):
    D = proj_w_ref.shape[1]
    Lp = cls_pos_ref.shape[0]
    num_layers = w_qkvo_ref.shape[0]
    H = num_heads
    ch = D // H

    # Patch embedding.  cls token, pos-embed and proj bias are all folded into
    # cls_pos (pad rows are exactly zero), so this is a single dot + add.
    h = (jnp.dot(patches_ref[...], proj_w_ref[...],
                 preferred_element_type=jnp.float32) + cls_pos_ref[...])
    key_mask = key_mask_ref[...]                      # (1, Lp): 0 / -1e30

    # ln_pre is nn.Identity() in the reference module (ln_pre=False default).
    for l in range(num_layers):                       # static unroll
        ln_l = ln_ref[l]                              # (4, D)

        # ---- attention branch: h + Attn(LN1(h)) ----
        xn = _layernorm(h, ln_l[0:1, :], ln_l[1:2, :])
        # Full 128-lane QKV dot; lanes [3D:4D) of the result are never read.
        qkv = (jnp.dot(xn, w_qkvo_ref[l], preferred_element_type=jnp.float32)
               + b_qkvo_ref[l])

        # Per-head scores, stacked along sublanes -> ONE batched softmax.
        scores = []
        for hh in range(H):
            qh = qkv[:, hh * ch:(hh + 1) * ch]        # pre-scaled by 1/sqrt(ch)
            kh = qkv[:, D + hh * ch:D + (hh + 1) * ch]
            scores.append(jax.lax.dot_general(
                qh, kh, (((1,), (1,)), ((), ())),
                preferred_element_type=jnp.float32))
        s = jnp.concatenate(scores, axis=0) + key_mask        # (H*Lp, Lp)
        s = s - jnp.max(s, axis=-1, keepdims=True)
        e = jnp.exp(s)
        p = e * pl.reciprocal(jnp.sum(e, axis=-1, keepdims=True), approx=True)

        # Per-head P @ V, packed along lanes -> ONE output-projection dot.
        ctxs = []
        for hh in range(H):
            ph = p[hh * Lp:(hh + 1) * Lp, :]
            vh = qkv[:, 2 * D + hh * ch:2 * D + (hh + 1) * ch]
            ctxs.append(jnp.dot(ph, vh, preferred_element_type=jnp.float32))
        ctx = jnp.concatenate(ctxs, axis=1)                    # (Lp, D)
        h = h + (jnp.dot(ctx, w_o_ref[l], preferred_element_type=jnp.float32)
                 + b_o_ref[l])

        # ---- MLP branch: h + MLP(LN2(h)), QuickGELU ----
        xn2 = _layernorm(h, ln_l[2:3, :], ln_l[3:4, :])
        hid = (jnp.dot(xn2, w1_ref[l], preferred_element_type=jnp.float32)
               + b1_ref[l])
        # QuickGELU: x * sigmoid(1.702 x); tanh form is exact and overflow-safe.
        hid = hid * (0.5 * (jnp.tanh(0.851 * hid) + 1.0))
        h = h + (jnp.dot(hid, w2_ref[l], preferred_element_type=jnp.float32)
                 + b2_ref[l])

    o_ref[...] = h.astype(o_ref.dtype)


# ------------------------------ glue / model ---------------------------------
def patchify_padded(x):
    """(B,C,H,W) -> (B, L_PAD, P): row 0 zero (cls slot), rows 1..Np are the
    PatchEmbed2D-ordered patches, rows Np+1..L_PAD-1 zero pads. XLA glue."""
    B, C, H, W = x.shape
    pH, pW = PATCH_SIZE
    assert C == IN_CHANNELS and H % pH == 0 and W % pW == 0
    Np = (H // pH) * (W // pW)
    P = C * pH * pW
    assert Np + 1 <= L_PAD
    xx = x.reshape(B, C, H // pH, pH, W // pW, pW)
    xx = xx.transpose(0, 2, 4, 1, 3, 5)              # (B, nH, nW, C, pH, pW)
    patches = xx.reshape(B, Np, P)
    return jnp.concatenate(
        [jnp.zeros((B, 1, P), x.dtype), patches,
         jnp.zeros((B, L_PAD - Np - 1, P), x.dtype)], axis=1)


def vit_forward(x, params):
    x = x.astype(jnp.float32)
    B = x.shape[0]
    D = FEATURE_DIM
    P = IN_CHANNELS * PATCH_SIZE[0] * PATCH_SIZE[1]
    Np = (INPUT_SIZE[0] // PATCH_SIZE[0]) * (INPUT_SIZE[1] // PATCH_SIZE[1])
    L = Np + 1
    mlp_dim = round(MLP_FACTOR * D)
    NL = NUM_LAYERS

    patches = patchify_padded(x)                     # (B, L_PAD, P)

    def fixed(shape):
        # Full-block spec with a constant index_map: weights/tables stay
        # resident in VMEM across the batch grid (no per-step re-DMA).
        n = len(shape)
        return pl.BlockSpec(shape, lambda b: (0,) * n)

    kernel = functools.partial(_vit_kernel, num_heads=NUM_HEADS)
    out = pl.pallas_call(
        kernel,
        out_shape=jax.ShapeDtypeStruct((B, L_PAD, D), jnp.float32),
        grid=(B,),
        in_specs=[
            pl.BlockSpec((None, L_PAD, P), lambda b: (b, 0, 0)),   # patches
            fixed((P, D)),                  # proj_w
            fixed((L_PAD, D)),              # cls_pos (cls + pos + proj_b fold)
            fixed((1, L_PAD)),              # additive key mask for pad tokens
            fixed((NL, 4, D)),              # ln params
            fixed((NL, D, 4 * D)),          # packed [wq*scale|wk|wv|wo]
            fixed((NL, D, D)),              # w_o
            fixed((NL, D, mlp_dim)),        # mlp fc1
            fixed((NL, mlp_dim, D)),        # mlp fc2
            fixed((NL, 1, 4 * D)),          # qkv bias (128-lane, last D zeros)
            fixed((NL, 1, D)),              # out-proj bias
            fixed((NL, 1, mlp_dim)),        # fc1 bias
            fixed((NL, 1, D)),              # fc2 bias
        ],
        out_specs=pl.BlockSpec((None, L_PAD, D), lambda b: (b, 0, 0)),
        compiler_params=pltpu.CompilerParams(
            dimension_semantics=("parallel",)),      # 2 TCs on v7x, no-op v5e/v6e
    )(patches, params["proj_w"], params["cls_pos"], params["key_mask"],
      params["ln"], params["w_qkvo"], params["w_o"], params["w_mlp1"],
      params["w_mlp2"], params["b_qkvo"], params["b_o"], params["b_mlp1"],
      params["b_mlp2"])
    return out[:, :L, :]                             # drop the 3 pad rows


# --------------------------- pure-JAX reference -------------------------------
def vit_reference(x, params):
    """Straight-line JAX reference (unpadded), same packed parameters."""
    x = x.astype(jnp.float32)
    B = x.shape[0]
    D = FEATURE_DIM
    H = NUM_HEADS
    ch = D // H
    pH, pW = PATCH_SIZE
    Np = (INPUT_SIZE[0] // pH) * (INPUT_SIZE[1] // pW)
    L = Np + 1

    xx = x.reshape(B, IN_CHANNELS, INPUT_SIZE[0] // pH, pH,
                   INPUT_SIZE[1] // pW, pW)
    xx = xx.transpose(0, 2, 4, 1, 3, 5).reshape(B, Np, -1)
    emb = xx @ params["proj_w"]                      # proj bias folded in cls_pos
    cls = jnp.broadcast_to(params["cls_pos"][0], (B, 1, D))
    h = jnp.concatenate([cls, emb + params["cls_pos"][1:L]], axis=1)

    def ln(v, g, b):
        mu = jnp.mean(v, axis=-1, keepdims=True)
        var = jnp.mean((v - mu) ** 2, axis=-1, keepdims=True)
        return (v - mu) * jax.lax.rsqrt(var + LN_EPS) * g + b

    for l in range(NUM_LAYERS):
        g1, be1, g2, be2 = params["ln"][l]
        xn = ln(h, g1, be1)
        qkv = xn @ params["w_qkvo"][l][:, :3 * D] + params["b_qkvo"][l][0, :3 * D]
        q = qkv[..., :D].reshape(B, L, H, ch)        # pre-scaled by 1/sqrt(ch)
        k = qkv[..., D:2 * D].reshape(B, L, H, ch)
        v = qkv[..., 2 * D:3 * D].reshape(B, L, H, ch)
        aff = jnp.einsum("nqhc,nkhc->nqkh", q, k)
        aff = jax.nn.softmax(aff, axis=-2)
        mix = jnp.einsum("nqlh,nlhc->nqhc", aff, v).reshape(B, L, D)
        h = h + mix @ params["w_o"][l] + params["b_o"][l][0]
        xn2 = ln(h, g2, be2)
        hid = xn2 @ params["w_mlp1"][l] + params["b_mlp1"][l][0]
        hid = hid * jax.nn.sigmoid(1.702 * hid)
        h = h + hid @ params["w_mlp2"][l] + params["b_mlp2"][l][0]
    return h


# ------------------------------ parameters ------------------------------------
def init_params(key):
    D = FEATURE_DIM
    H = NUM_HEADS
    ch = D // H
    P = IN_CHANNELS * PATCH_SIZE[0] * PATCH_SIZE[1]
    mlp_dim = round(MLP_FACTOR * D)
    Np = (INPUT_SIZE[0] // PATCH_SIZE[0]) * (INPUT_SIZE[1] // PATCH_SIZE[1])
    L = Np + 1
    scale = 1.0 / (ch ** 0.5)

    keys = jax.random.split(key, 4 + NUM_LAYERS)

    def xavier(k, fan_in, fan_out):
        a = (6.0 / (fan_in + fan_out)) ** 0.5
        return jax.random.uniform(k, (fan_in, fan_out), jnp.float32, -a, a)

    # Patch projection stored transposed (in, out) so the kernel does x @ W.
    proj_w = jax.random.normal(keys[0], (P, D), jnp.float32) * (2.0 / P) ** 0.5
    proj_b = jax.random.normal(keys[1], (D,), jnp.float32) * 0.02
    cls_token = jax.random.normal(keys[2], (D,), jnp.float32) * 0.02
    pos_embed = jax.random.normal(keys[3], (L, D), jnp.float32) * 0.02

    # Fold cls token, positional embedding and proj bias into one additive
    # table: row 0 = cls + pos[0] (its patch row is all-zero, so no proj bias),
    # rows 1..Np = pos[i] + proj_b, pad rows = 0 (pad embeddings are exactly 0).
    cls_pos = jnp.zeros((L_PAD, D), jnp.float32)
    cls_pos = cls_pos.at[0].set(cls_token + pos_embed[0])
    cls_pos = cls_pos.at[1:L].set(pos_embed[1:] + proj_b)

    # Additive key mask: 0 for the L real tokens, -1e30 for the L_PAD-L pads.
    key_mask = jnp.where(jnp.arange(L_PAD) < L, 0.0,
                         -1e30).astype(jnp.float32)[None, :]

    ln_l, wqkvo_l, wo_l, w1_l, w2_l = [], [], [], [], []
    bqkvo_l, bo_l, b1_l, b2_l = [], [], [], []
    for l in range(NUM_LAYERS):
        k = jax.random.split(keys[4 + l], 8)
        wq = xavier(k[0], D, D) * scale              # fold 1/sqrt(d_head) into Q
        wk = xavier(k[1], D, D)
        wv = xavier(k[2], D, D)
        wo = xavier(k[3], D, D)
        bq = jnp.zeros((D,), jnp.float32)
        bk = jnp.zeros((D,), jnp.float32)
        bv = jnp.zeros((D,), jnp.float32)
        bo = jnp.zeros((D,), jnp.float32)
        w1 = xavier(k[4], D, mlp_dim)
        b1 = jax.random.normal(k[5], (mlp_dim,), jnp.float32) * 1e-6
        w2 = xavier(k[6], mlp_dim, D)
        b2 = jax.random.normal(k[7], (D,), jnp.float32) * 1e-6

        ln_l.append(jnp.stack([jnp.ones((D,), jnp.float32),
                               jnp.zeros((D,), jnp.float32),
                               jnp.ones((D,), jnp.float32),
                               jnp.zeros((D,), jnp.float32)], axis=0))
        # Full 128-lane packed QKV weight: 4th block (wo) makes the dot exactly
        # 128 lanes wide; its output columns are never read in the kernel.
        wqkvo_l.append(jnp.concatenate([wq, wk, wv, wo], axis=1))    # (D, 4D)
        bqkvo_l.append(jnp.concatenate(
            [bq * scale, bk, bv, jnp.zeros((D,), jnp.float32)])[None, :])
        wo_l.append(wo)
        bo_l.append(bo[None, :])
        w1_l.append(w1)
        b1_l.append(b1[None, :])
        w2_l.append(w2)
        b2_l.append(b2[None, :])

    return {
        "proj_w": proj_w,
        "cls_pos": cls_pos,                          # (L_PAD, D)
        "key_mask": key_mask,                        # (1, L_PAD)
        "ln": jnp.stack(ln_l, axis=0),               # (NL, 4, D)
        "w_qkvo": jnp.stack(wqkvo_l, axis=0),        # (NL, D, 4D)
        "w_o": jnp.stack(wo_l, axis=0),              # (NL, D, D)
        "w_mlp1": jnp.stack(w1_l, axis=0),           # (NL, D, mlp)
        "w_mlp2": jnp.stack(w2_l, axis=0),           # (NL, mlp, D)
        "b_qkvo": jnp.stack(bqkvo_l, axis=0),        # (NL, 1, 4D)
        "b_o": jnp.stack(bo_l, axis=0),              # (NL, 1, D)
        "b_mlp1": jnp.stack(b1_l, axis=0),           # (NL, 1, mlp)
        "b_mlp2": jnp.stack(b2_l, axis=0),           # (NL, 1, D)
    }


# --------------------------------- main ---------------------------------------
if __name__ == "__main__":
    key = jax.random.PRNGKey(0)
    k_param, k_x = jax.random.split(key)
    params = init_params(k_param)

    # NCHW input, like the PyTorch module.
    x = jax.random.normal(k_x, (2, IN_CHANNELS, INPUT_SIZE[0], INPUT_SIZE[1]),
                          jnp.float32)

    out = jax.jit(vit_forward)(x, params)
    out = jax.block_until_ready(out)

    expected_L = (INPUT_SIZE[0] // PATCH_SIZE[0]) * \
                 (INPUT_SIZE[1] // PATCH_SIZE[1]) + 1
    assert out.shape == (2, expected_L, FEATURE_DIM)
    assert bool(jnp.all(jnp.isfinite(out)))

    # Check against a straight-line JAX reference (loose tolerance covers the
    # approx EUP reciprocal used for the softmax denominator).
    ref = vit_reference(x, params)
    max_err = float(jnp.max(jnp.abs(out - ref)))
    assert max_err < 1e-2, f"max abs error vs reference: {max_err}"
    print("KERNEL_OK")
</pallas_src>

<mosaic_0001>
module attributes {stable_mosaic.version = 11 : i64} {
  func.func @_vit_kernel(%arg0: i32, %arg1: memref<1x8x192xf32, #tpu.memory_space<vmem>>, %arg2: memref<192x32xf32, #tpu.memory_space<vmem>>, %arg3: memref<8x32xf32, #tpu.memory_space<vmem>>, %arg4: memref<1x8xf32, #tpu.memory_space<vmem>>, %arg5: memref<2x4x32xf32, #tpu.memory_space<vmem>>, %arg6: memref<2x32x128xf32, #tpu.memory_space<vmem>>, %arg7: memref<2x32x32xf32, #tpu.memory_space<vmem>>, %arg8: memref<2x32x128xf32, #tpu.memory_space<vmem>>, %arg9: memref<2x128x32xf32, #tpu.memory_space<vmem>>, %arg10: memref<2x1x128xf32, #tpu.memory_space<vmem>>, %arg11: memref<2x1x32xf32, #tpu.memory_space<vmem>>, %arg12: memref<2x1x128xf32, #tpu.memory_space<vmem>>, %arg13: memref<2x1x32xf32, #tpu.memory_space<vmem>>, %arg14: memref<1x8x32xf32, #tpu.memory_space<vmem>>) attributes {dimension_semantics = [#tpu.dimension_semantics<parallel>], iteration_bounds = array<i64: 2>, scalar_prefetch = 0 : i64, scratch_operands = 0 : i64, tpu.core_type = #tpu.core_type<tc>, window_params = [{transform_indices = @transform_0, window_bounds = array<i64: 1, 8, 192>}, {pipeline_mode = #tpu.pipeline_mode<synchronous>, transform_indices = @transform_1, window_bounds = array<i64: 192, 32>}, {pipeline_mode = #tpu.pipeline_mode<synchronous>, transform_indices = @transform_2, window_bounds = array<i64: 8, 32>}, {pipeline_mode = #tpu.pipeline_mode<synchronous>, transform_indices = @transform_3, window_bounds = array<i64: 1, 8>}, {pipeline_mode = #tpu.pipeline_mode<synchronous>, transform_indices = @transform_4, window_bounds = array<i64: 2, 4, 32>}, {pipeline_mode = #tpu.pipeline_mode<synchronous>, transform_indices = @transform_5, window_bounds = array<i64: 2, 32, 128>}, {pipeline_mode = #tpu.pipeline_mode<synchronous>, transform_indices = @transform_6, window_bounds = array<i64: 2, 32, 32>}, {pipeline_mode = #tpu.pipeline_mode<synchronous>, transform_indices = @transform_7, window_bounds = array<i64: 2, 32, 128>}, {pipeline_mode = #tpu.pipeline_mode<synchronous>, transform_indices = @transform_8, window_bounds = array<i64: 2, 128, 32>}, {pipeline_mode = #tpu.pipeline_mode<synchronous>, transform_indices = @transform_9, window_bounds = array<i64: 2, 1, 128>}, {pipeline_mode = #tpu.pipeline_mode<synchronous>, transform_indices = @transform_10, window_bounds = array<i64: 2, 1, 32>}, {pipeline_mode = #tpu.pipeline_mode<synchronous>, transform_indices = @transform_11, window_bounds = array<i64: 2, 1, 128>}, {pipeline_mode = #tpu.pipeline_mode<synchronous>, transform_indices = @transform_12, window_bounds = array<i64: 2, 1, 32>}, {transform_indices = @transform_13, window_bounds = array<i64: 1, 8, 32>}]} {
    %c0 = arith.constant 0 : index
    %c0_0 = arith.constant 0 : index
    %c0_1 = arith.constant 0 : index
    %0 = vector.load %arg1[%c0, %c0_0, %c0_1] : memref<1x8x192xf32, #tpu.memory_space<vmem>>, vector<1x8x192xf32>
    %1 = vector.shape_cast %0 : vector<1x8x192xf32> to vector<8x192xf32>
    %c0_2 = arith.constant 0 : index
    %c0_3 = arith.constant 0 : index
    %2 = vector.load %arg2[%c0_2, %c0_3] : memref<192x32xf32, #tpu.memory_space<vmem>>, vector<192x32xf32>
    %cst = arith.constant dense<0.000000e+00> : vector<8x32xf32>
    %3 = tpu.matmul %1, %2, %cst {dimension_numbers = #tpu.dot_dimension_numbers<[1], [0], [0], [1], [0, 0, 1, 1], [], []>} : vector<8x192xf32>, vector<192x32xf32>, vector<8x32xf32> -> vector<8x32xf32>
    %c0_4 = arith.constant 0 : index
    %c0_5 = arith.constant 0 : index
    %4 = vector.load %arg3[%c0_4, %c0_5] : memref<8x32xf32, #tpu.memory_space<vmem>>, vector<8x32xf32>
    %5 = arith.addf %3, %4 : vector<8x32xf32>
    %c0_6 = arith.constant 0 : index
    %c0_7 = arith.constant 0 : index
    %6 = vector.load %arg4[%c0_6, %c0_7] : memref<1x8xf32, #tpu.memory_space<vmem>>, vector<1x8xf32>
    %c0_8 = arith.constant 0 : index
    %c0_9 = arith.constant 0 : index
    %c0_10 = arith.constant 0 : index
    %7 = vector.load %arg5[%c0_8, %c0_9, %c0_10] : memref<2x4x32xf32, #tpu.memory_space<vmem>>, vector<1x4x32xf32>
    %8 = vector.shape_cast %7 : vector<1x4x32xf32> to vector<4x32xf32>
    %9 = vector.extract_strided_slice %8 {offsets = [0, 0], sizes = [1, 32], strides = [1, 1]} : vector<4x32xf32> to vector<1x32xf32>
    %10 = vector.extract_strided_slice %8 {offsets = [1, 0], sizes = [1, 32], strides = [1, 1]} : vector<4x32xf32> to vector<1x32xf32>
    %cst_11 = arith.constant dense<0.000000e+00> : vector<8xf32>
    %11 = vector.multi_reduction <add>, %5, %cst_11 [1] : vector<8x32xf32> to vector<8xf32>
    %12 = vector.shape_cast %11 : vector<8xf32> to vector<8x1xf32>
    %cst_12 = arith.constant 3.200000e+01 : f32
    %13 = vector.broadcast %cst_12 : f32 to vector<8x1xf32>
    %14 = arith.divf %12, %13 : vector<8x1xf32>
    %15 = vector.broadcast %14 : vector<8x1xf32> to vector<8x32xf32>
    %16 = arith.subf %5, %15 : vector<8x32xf32>
    %17 = arith.mulf %16, %16 : vector<8x32xf32>
    %cst_13 = arith.constant dense<0.000000e+00> : vector<8xf32>
    %18 = vector.multi_reduction <add>, %17, %cst_13 [1] : vector<8x32xf32> to vector<8xf32>
    %19 = vector.shape_cast %18 : vector<8xf32> to vector<8x1xf32>
    %cst_14 = arith.constant 3.200000e+01 : f32
    %20 = vector.broadcast %cst_14 : f32 to vector<8x1xf32>
    %21 = arith.divf %19, %20 : vector<8x1xf32>
    %22 = vector.broadcast %14 : vector<8x1xf32> to vector<8x32xf32>
    %23 = arith.subf %5, %22 : vector<8x32xf32>
    %cst_15 = arith.constant 9.99999974E-6 : f32
    %24 = vector.broadcast %cst_15 : f32 to vector<8x1xf32>
    %25 = arith.addf %21, %24 : vector<8x1xf32>
    %26 = math.rsqrt %25 : vector<8x1xf32>
    %27 = vector.broadcast %26 : vector<8x1xf32> to vector<8x32xf32>
    %28 = arith.mulf %23, %27 : vector<8x32xf32>
    %29 = vector.broadcast %9 : vector<1x32xf32> to vector<8x32xf32>
    %30 = arith.mulf %28, %29 : vector<8x32xf32>
    %31 = vector.broadcast %10 : vector<1x32xf32> to vector<8x32xf32>
    %32 = arith.addf %30, %31 : vector<8x32xf32>
    %c0_16 = arith.constant 0 : index
    %c0_17 = arith.constant 0 : index
    %c0_18 = arith.constant 0 : index
    %33 = vector.load %arg6[%c0_16, %c0_17, %c0_18] : memref<2x32x128xf32, #tpu.memory_space<vmem>>, vector<1x32x128xf32>
    %34 = vector.shape_cast %33 : vector<1x32x128xf32> to vector<32x128xf32>
    %cst_19 = arith.constant dense<0.000000e+00> : vector<8x128xf32>
    %35 = tpu.matmul %32, %34, %cst_19 {dimension_numbers = #tpu.dot_dimension_numbers<[1], [0], [0], [1], [0, 0, 1, 1], [], []>} : vector<8x32xf32>, vector<32x128xf32>, vector<8x128xf32> -> vector<8x128xf32>
    %c0_20 = arith.constant 0 : index
    %c0_21 = arith.constant 0 : index
    %c0_22 = arith.constant 0 : index
    %36 = vector.load %arg10[%c0_20, %c0_21, %c0_22] : memref<2x1x128xf32, #tpu.memory_space<vmem>>, vector<1x1x128xf32>
    %37 = vector.shape_cast %36 : vector<1x1x128xf32> to vector<1x128xf32>
    %38 = vector.broadcast %37 : vector<1x128xf32> to vector<8x128xf32>
    %39 = arith.addf %35, %38 : vector<8x128xf32>
    %40 = vector.extract_strided_slice %39 {offsets = [0, 0], sizes = [8, 8], strides = [1, 1]} : vector<8x128xf32> to vector<8x8xf32>
    %41 = vector.extract_strided_slice %39 {offsets = [0, 32], sizes = [8, 8], strides = [1, 1]} : vector<8x128xf32> to vector<8x8xf32>
    %cst_23 = arith.constant dense<0.000000e+00> : vector<8x8xf32>
    %42 = tpu.matmul %40, %41, %cst_23 {dimension_numbers = #tpu.dot_dimension_numbers<[1], [1], [0], [0], [0, 0, 1, 0], [], []>} : vector<8x8xf32>, vector<8x8xf32>, vector<8x8xf32> -> vector<8x8xf32>
    %43 = vector.extract_strided_slice %39 {offsets = [0, 8], sizes = [8, 8], strides = [1, 1]} : vector<8x128xf32> to vector<8x8xf32>
    %44 = vector.extract_strided_slice %39 {offsets = [0, 40], sizes = [8, 8], strides = [1, 1]} : vector<8x128xf32> to vector<8x8xf32>
    %cst_24 = arith.constant dense<0.000000e+00> : vector<8x8xf32>
    %45 = tpu.matmul %43, %44, %cst_24 {dimension_numbers = #tpu.dot_dimension_numbers<[1], [1], [0], [0], [0, 0, 1, 0], [], []>} : vector<8x8xf32>, vector<8x8xf32>, vector<8x8xf32> -> vector<8x8xf32>
    %46 = vector.extract_strided_slice %39 {offsets = [0, 16], sizes = [8, 8], strides = [1, 1]} : vector<8x128xf32> to vector<8x8xf32>
    %47 = vector.extract_strided_slice %39 {offsets = [0, 48], sizes = [8, 8], strides = [1, 1]} : vector<8x128xf32> to vector<8x8xf32>
    %cst_25 = arith.constant dense<0.000000e+00> : vector<8x8xf32>
    %48 = tpu.matmul %46, %47, %cst_25 {dimension_numbers = #tpu.dot_dimension_numbers<[1], [1], [0], [0], [0, 0, 1, 0], [], []>} : vector<8x8xf32>, vector<8x8xf32>, vector<8x8xf32> -> vector<8x8xf32>
    %49 = vector.extract_strided_slice %39 {offsets = [0, 24], sizes = [8, 8], strides = [1, 1]} : vector<8x128xf32> to vector<8x8xf32>
    %50 = vector.extract_strided_slice %39 {offsets = [0, 56], sizes = [8, 8], strides = [1, 1]} : vector<8x128xf32> to vector<8x8xf32>
    %cst_26 = arith.constant dense<0.000000e+00> : vector<8x8xf32>
    %51 = tpu.matmul %49, %50, %cst_26 {dimension_numbers = #tpu.dot_dimension_numbers<[1], [1], [0], [0], [0, 0, 1, 0], [], []>} : vector<8x8xf32>, vector<8x8xf32>, vector<8x8xf32> -> vector<8x8xf32>
    %52 = tpu.concatenate %42, %45, %48, %51 in 0 : vector<8x8xf32>, vector<8x8xf32>, vector<8x8xf32>, vector<8x8xf32> -> vector<32x8xf32>
    %53 = vector.broadcast %6 : vector<1x8xf32> to vector<32x8xf32>
    %54 = arith.addf %52, %53 : vector<32x8xf32>
    %cst_27 = arith.constant dense<0xFF800000> : vector<32xf32>
    %55 = vector.multi_reduction <maximumf>, %54, %cst_27 [1] : vector<32x8xf32> to vector<32xf32>
    %56 = vector.shape_cast %55 : vector<32xf32> to vector<32x1xf32>
    %57 = vector.broadcast %56 : vector<32x1xf32> to vector<32x8xf32>
    %58 = arith.subf %54, %57 : vector<32x8xf32>
    %59 = math.exp %58 : vector<32x8xf32>
    %cst_28 = arith.constant dense<0.000000e+00> : vector<32xf32>
    %60 = vector.multi_reduction <add>, %59, %cst_28 [1] : vector<32x8xf32> to vector<32xf32>
    %61 = vector.shape_cast %60 : vector<32xf32> to vector<32x1xf32>
    %62 = tpu.reciprocal %61 {approx = true} : vector<32x1xf32> -> vector<32x1xf32>
    %63 = vector.broadcast %62 : vector<32x1xf32> to vector<32x8xf32>
    %64 = arith.mulf %59, %63 : vector<32x8xf32>
    %65 = vector.extract_strided_slice %64 {offsets = [0, 0], sizes = [8, 8], strides = [1, 1]} : vector<32x8xf32> to vector<8x8xf32>
    %66 = vector.extract_strided_slice %39 {offsets = [0, 64], sizes = [8, 8], strides = [1, 1]} : vector<8x128xf32> to vector<8x8xf32>
    %cst_29 = arith.constant dense<0.000000e+00> : vector<8x8xf32>
    %67 = tpu.matmul %65, %66, %cst_29 {dimension_numbers = #tpu.dot_dimension_numbers<[1], [0], [0], [1], [0, 0, 1, 1], [], []>} : vector<8x8xf32>, vector<8x8xf32>, vector<8x8xf32> -> vector<8x8xf32>
    %68 = vector.extract_strided_slice %64 {offsets = [8, 0], sizes = [8, 8], strides = [1, 1]} : vector<32x8xf32> to vector<8x8xf32>
    %69 = vector.extract_strided_slice %39 {offsets = [0, 72], sizes = [8, 8], strides = [1, 1]} : vector<8x128xf32> to vector<8x8xf32>
    %cst_30 = arith.constant dense<0.000000e+00> : vector<8x8xf32>
    %70 = tpu.matmul %68, %69, %cst_30 {dimension_numbers = #tpu.dot_dimension_numbers<[1], [0], [0], [1], [0, 0, 1, 1], [], []>} : vector<8x8xf32>, vector<8x8xf32>, vector<8x8xf32> -> vector<8x8xf32>
    %71 = vector.extract_strided_slice %64 {offsets = [16, 0], sizes = [8, 8], strides = [1, 1]} : vector<32x8xf32> to vector<8x8xf32>
    %72 = vector.extract_strided_slice %39 {offsets = [0, 80], sizes = [8, 8], strides = [1, 1]} : vector<8x128xf32> to vector<8x8xf32>
    %cst_31 = arith.constant dense<0.000000e+00> : vector<8x8xf32>
    %73 = tpu.matmul %71, %72, %cst_31 {dimension_numbers = #tpu.dot_dimension_numbers<[1], [0], [0], [1], [0, 0, 1, 1], [], []>} : vector<8x8xf32>, vector<8x8xf32>, vector<8x8xf32> -> vector<8x8xf32>
    %74 = vector.extract_strided_slice %64 {offsets = [24, 0], sizes = [8, 8], strides = [1, 1]} : vector<32x8xf32> to vector<8x8xf32>
    %75 = vector.extract_strided_slice %39 {offsets = [0, 88], sizes = [8, 8], strides = [1, 1]} : vector<8x128xf32> to vector<8x8xf32>
    %cst_32 = arith.constant dense<0.000000e+00> : vector<8x8xf32>
    %76 = tpu.matmul %74, %75, %cst_32 {dimension_numbers = #tpu.dot_dimension_numbers<[1], [0], [0], [1], [0, 0, 1, 1], [], []>} : vector<8x8xf32>, vector<8x8xf32>, vector<8x8xf32> -> vector<8x8xf32>
    %77 = tpu.concatenate %67, %70, %73, %76 in 1 : vector<8x8xf32>, vector<8x8xf32>, vector<8x8xf32>, vector<8x8xf32> -> vector<8x32xf32>
    %c0_33 = arith.constant 0 : index
    %c0_34 = arith.constant 0 : index
    %c0_35 = arith.constant 0 : index
    %78 = vector.load %arg7[%c0_33, %c0_34, %c0_35] : memref<2x32x32xf32, #tpu.memory_space<vmem>>, vector<1x32x32xf32>
    %79 = vector.shape_cast %78 : vector<1x32x32xf32> to vector<32x32xf32>
    %cst_36 = arith.constant dense<0.000000e+00> : vector<8x32xf32>
    %80 = tpu.matmul %77, %79, %cst_36 {dimension_numbers = #tpu.dot_dimension_numbers<[1], [0], [0], [1], [0, 0, 1, 1], [], []>} : vector<8x32xf32>, vector<32x32xf32>, vector<8x32xf32> -> vector<8x32xf32>
    %c0_37 = arith.constant 0 : index
    %c0_38 = arith.constant 0 : index
    %c0_39 = arith.constant 0 : index
    %81 = vector.load %arg11[%c0_37, %c0_38, %c0_39] : memref<2x1x32xf32, #tpu.memory_space<vmem>>, vector<1x1x32xf32>
    %82 = vector.shape_cast %81 : vector<1x1x32xf32> to vector<1x32xf32>
    %83 = vector.broadcast %82 : vector<1x32xf32> to vector<8x32xf32>
    %84 = arith.addf %80, %83 : vector<8x32xf32>
    %85 = arith.addf %5, %84 : vector<8x32xf32>
    %86 = vector.extract_strided_slice %8 {offsets = [2, 0], sizes = [1, 32], strides = [1, 1]} : vector<4x32xf32> to vector<1x32xf32>
    %87 = vector.extract_strided_slice %8 {offsets = [3, 0], sizes = [1, 32], strides = [1, 1]} : vector<4x32xf32> to vector<1x32xf32>
    %cst_40 = arith.constant dense<0.000000e+00> : vector<8xf32>
    %88 = vector.multi_reduction <add>, %85, %cst_40 [1] : vector<8x32xf32> to vector<8xf32>
    %89 = vector.shape_cast %88 : vector<8xf32> to vector<8x1xf32>
    %cst_41 = arith.constant 3.200000e+01 : f32
    %90 = vector.broadcast %cst_41 : f32 to vector<8x1xf32>
    %91 = arith.divf %89, %90 : vector<8x1xf32>
    %92 = vector.broadcast %91 : vector<8x1xf32> to vector<8x32xf32>
    %93 = arith.subf %85, %92 : vector<8x32xf32>
    %94 = arith.mulf %93, %93 : vector<8x32xf32>
    %cst_42 = arith.constant dense<0.000000e+00> : vector<8xf32>
    %95 = vector.multi_reduction <add>, %94, %cst_42 [1] : vector<8x32xf32> to vector<8xf32>
    %96 = vector.shape_cast %95 : vector<8xf32> to vector<8x1xf32>
    %cst_43 = arith.constant 3.200000e+01 : f32
    %97 = vector.broadcast %cst_43 : f32 to vector<8x1xf32>
    %98 = arith.divf %96, %97 : vector<8x1xf32>
    %99 = vector.broadcast %91 : vector<8x1xf32> to vector<8x32xf32>
    %100 = arith.subf %85, %99 : vector<8x32xf32>
    %cst_44 = arith.constant 9.99999974E-6 : f32
    %101 = vector.broadcast %cst_44 : f32 to vector<8x1xf32>
    %102 = arith.addf %98, %101 : vector<8x1xf32>
    %103 = math.rsqrt %102 : vector<8x1xf32>
    %104 = vector.broadcast %103 : vector<8x1xf32> to vector<8x32xf32>
    %105 = arith.mulf %100, %104 : vector<8x32xf32>
    %106 = vector.broadcast %86 : vector<1x32xf32> to vector<8x32xf32>
    %107 = arith.mulf %105, %106 : vector<8x32xf32>
    %108 = vector.broadcast %87 : vector<1x32xf32> to vector<8x32xf32>
    %109 = arith.addf %107, %108 : vector<8x32xf32>
    %c0_45 = arith.constant 0 : index
    %c0_46 = arith.constant 0 : index
    %c0_47 = arith.constant 0 : index
    %110 = vector.load %arg8[%c0_45, %c0_46, %c0_47] : memref<2x32x128xf32, #tpu.memory_space<vmem>>, vector<1x32x128xf32>
    %111 = vector.shape_cast %110 : vector<1x32x128xf32> to vector<32x128xf32>
    %cst_48 = arith.constant dense<0.000000e+00> : vector<8x128xf32>
    %112 = tpu.matmul %109, %111, %cst_48 {dimension_numbers = #tpu.dot_dimension_numbers<[1], [0], [0], [1], [0, 0, 1, 1], [], []>} : vector<8x32xf32>, vector<32x128xf32>, vector<8x128xf32> -> vector<8x128xf32>
    %c0_49 = arith.constant 0 : index
    %c0_50 = arith.constant 0 : index
    %c0_51 = arith.constant 0 : index
    %113 = vector.load %arg12[%c0_49, %c0_50, %c0_51] : memref<2x1x128xf32, #tpu.memory_space<vmem>>, vector<1x1x128xf32>
    %114 = vector.shape_cast %113 : vector<1x1x128xf32> to vector<1x128xf32>
    %115 = vector.broadcast %114 : vector<1x128xf32> to vector<8x128xf32>
    %116 = arith.addf %112, %115 : vector<8x128xf32>
    %cst_52 = arith.constant 8.510000e-01 : f32
    %117 = vector.broadcast %cst_52 : f32 to vector<8x128xf32>
    %118 = arith.mulf %117, %116 : vector<8x128xf32>
    %119 = math.tanh %118 : vector<8x128xf32>
    %cst_53 = arith.constant 1.000000e+00 : f32
    %120 = vector.broadcast %cst_53 : f32 to vector<8x128xf32>
    %121 = arith.addf %119, %120 : vector<8x128xf32>
    %cst_54 = arith.constant 5.000000e-01 : f32
    %122 = vector.broadcast %cst_54 : f32 to vector<8x128xf32>
    %123 = arith.mulf %122, %121 : vector<8x128xf32>
    %124 = arith.mulf %116, %123 : vector<8x128xf32>
    %c0_55 = arith.constant 0 : index
    %c0_56 = arith.constant 0 : index
    %c0_57 = arith.constant 0 : index
    %125 = vector.load %arg9[%c0_55, %c0_56, %c0_57] : memref<2x128x32xf32, #tpu.memory_space<vmem>>, vector<1x128x32xf32>
    %126 = vector.shape_cast %125 : vector<1x128x32xf32> to vector<128x32xf32>
    %cst_58 = arith.constant dense<0.000000e+00> : vector<8x32xf32>
    %127 = tpu.matmul %124, %126, %cst_58 {dimension_numbers = #tpu.dot_dimension_numbers<[1], [0], [0], [1], [0, 0, 1, 1], [], []>} : vector<8x128xf32>, vector<128x32xf32>, vector<8x32xf32> -> vector<8x32xf32>
    %c0_59 = arith.constant 0 : index
    %c0_60 = arith.constant 0 : index
    %c0_61 = arith.constant 0 : index
    %128 = vector.load %arg13[%c0_59, %c0_60, %c0_61] : memref<2x1x32xf32, #tpu.memory_space<vmem>>, vector<1x1x32xf32>
    %129 = vector.shape_cast %128 : vector<1x1x32xf32> to vector<1x32xf32>
    %130 = vector.broadcast %129 : vector<1x32xf32> to vector<8x32xf32>
    %131 = arith.addf %127, %130 : vector<8x32xf32>
    %132 = arith.addf %85, %131 : vector<8x32xf32>
    %c1 = arith.constant 1 : index
    %c0_62 = arith.constant 0 : index
    %c0_63 = arith.constant 0 : index
    %133 = vector.load %arg5[%c1, %c0_62, %c0_63] : memref<2x4x32xf32, #tpu.memory_space<vmem>>, vector<1x4x32xf32>
    %134 = vector.shape_cast %133 : vector<1x4x32xf32> to vector<4x32xf32>
    %135 = vector.extract_strided_slice %134 {offsets = [0, 0], sizes = [1, 32], strides = [1, 1]} : vector<4x32xf32> to vector<1x32xf32>
    %136 = vector.extract_strided_slice %134 {offsets = [1, 0], sizes = [1, 32], strides = [1, 1]} : vector<4x32xf32> to vector<1x32xf32>
    %cst_64 = arith.constant dense<0.000000e+00> : vector<8xf32>
    %137 = vector.multi_reduction <add>, %132, %cst_64 [1] : vector<8x32xf32> to vector<8xf32>
    %138 = vector.shape_cast %137 : vector<8xf32> to vector<8x1xf32>
    %cst_65 = arith.constant 3.200000e+01 : f32
    %139 = vector.broadcast %cst_65 : f32 to vector<8x1xf32>
    %140 = arith.divf %138, %139 : vector<8x1xf32>
    %141 = vector.broadcast %140 : vector<8x1xf32> to vector<8x32xf32>
    %142 = arith.subf %132, %141 : vector<8x32xf32>
    %143 = arith.mulf %142, %142 : vector<8x32xf32>
    %cst_66 = arith.constant dense<0.000000e+00> : vector<8xf32>
    %144 = vector.multi_reduction <add>, %143, %cst_66 [1] : vector<8x32xf32> to vector<8xf32>
    %145 = vector.shape_cast %144 : vector<8xf32> to vector<8x1xf32>
    %cst_67 = arith.constant 3.200000e+01 : f32
    %146 = vector.broadcast %cst_67 : f32 to vector<8x1xf32>
    %147 = arith.divf %145, %146 : vector<8x1xf32>
    %148 = vector.broadcast %140 : vector<8x1xf32> to vector<8x32xf32>
    %149 = arith.subf %132, %148 : vector<8x32xf32>
    %cst_68 = arith.constant 9.99999974E-6 : f32
    %150 = vector.broadcast %cst_68 : f32 to vector<8x1xf32>
    %151 = arith.addf %147, %150 : vector<8x1xf32>
    %152 = math.rsqrt %151 : vector<8x1xf32>
    %153 = vector.broadcast %152 : vector<8x1xf32> to vector<8x32xf32>
    %154 = arith.mulf %149, %153 : vector<8x32xf32>
    %155 = vector.broadcast %135 : vector<1x32xf32> to vector<8x32xf32>
    %156 = arith.mulf %154, %155 : vector<8x32xf32>
    %157 = vector.broadcast %136 : vector<1x32xf32> to vector<8x32xf32>
    %158 = arith.addf %156, %157 : vector<8x32xf32>
    %c1_69 = arith.constant 1 : index
    %c0_70 = arith.constant 0 : index
    %c0_71 = arith.constant 0 : index
    %159 = vector.load %arg6[%c1_69, %c0_70, %c0_71] : memref<2x32x128xf32, #tpu.memory_space<vmem>>, vector<1x32x128xf32>
    %160 = vector.shape_cast %159 : vector<1x32x128xf32> to vector<32x128xf32>
    %cst_72 = arith.constant dense<0.000000e+00> : vector<8x128xf32>
    %161 = tpu.matmul %158, %160, %cst_72 {dimension_numbers = #tpu.dot_dimension_numbers<[1], [0], [0], [1], [0, 0, 1, 1], [], []>} : vector<8x32xf32>, vector<32x128xf32>, vector<8x128xf32> -> vector<8x128xf32>
    %c1_73 = arith.constant 1 : index
    %c0_74 = arith.constant 0 : index
    %c0_75 = arith.constant 0 : index
    %162 = vector.load %arg10[%c1_73, %c0_74, %c0_75] : memref<2x1x128xf32, #tpu.memory_space<vmem>>, vector<1x1x128xf32>
    %163 = vector.shape_cast %162 : vector<1x1x128xf32> to vector<1x128xf32>
    %164 = vector.broadcast %163 : vector<1x128xf32> to vector<8x128xf32>
    %165 = arith.addf %161, %164 : vector<8x128xf32>
    %166 = vector.extract_strided_slice %165 {offsets = [0, 0], sizes = [8, 8], strides = [1, 1]} : vector<8x128xf32> to vector<8x8xf32>
    %167 = vector.extract_strided_slice %165 {offsets = [0, 32], sizes = [8, 8], strides = [1, 1]} : vector<8x128xf32> to vector<8x8xf32>
    %cst_76 = arith.constant dense<0.000000e+00> : vector<8x8xf32>
    %168 = tpu.matmul %166, %167, %cst_76 {dimension_numbers = #tpu.dot_dimension_numbers<[1], [1], [0], [0], [0, 0, 1, 0], [], []>} : vector<8x8xf32>, vector<8x8xf32>, vector<8x8xf32> -> vector<8x8xf32>
    %169 = vector.extract_strided_slice %165 {offsets = [0, 8], sizes = [8, 8], strides = [1, 1]} : vector<8x128xf32> to vector<8x8xf32>
    %170 = vector.extract_strided_slice %165 {offsets = [0, 40], sizes = [8, 8], strides = [1, 1]} : vector<8x128xf32> to vector<8x8xf32>
    %cst_77 = arith.constant dense<0.000000e+00> : vector<8x8xf32>
    %171 = tpu.matmul %169, %170, %cst_77 {dimension_numbers = #tpu.dot_dimension_numbers<[1], [1], [0], [0], [0, 0, 1, 0], [], []>} : vector<8x8xf32>, vector<8x8xf32>, vector<8x8xf32> -> vector<8x8xf32>
    %172 = vector.extract_strided_slice %165 {offsets = [0, 16], sizes = [8, 8], strides = [1, 1]} : vector<8x128xf32> to vector<8x8xf32>
    %173 = vector.extract_strided_slice %165 {offsets = [0, 48], sizes = [8, 8], strides = [1, 1]} : vector<8x128xf32> to vector<8x8xf32>
    %cst_78 = arith.constant dense<0.000000e+00> : vector<8x8xf32>
    %174 = tpu.matmul %172, %173, %cst_78 {dimension_numbers = #tpu.dot_dimension_numbers<[1], [1], [0], [0], [0, 0, 1, 0], [], []>} : vector<8x8xf32>, vector<8x8xf32>, vector<8x8xf32> -> vector<8x8xf32>
    %175 = vector.extract_strided_slice %165 {offsets = [0, 24], sizes = [8, 8], strides = [1, 1]} : vector<8x128xf32> to vector<8x8xf32>
    %176 = vector.extract_strided_slice %165 {offsets = [0, 56], sizes = [8, 8], strides = [1, 1]} : vector<8x128xf32> to vector<8x8xf32>
    %cst_79 = arith.constant dense<0.000000e+00> : vector<8x8xf32>
    %177 = tpu.matmul %175, %176, %cst_79 {dimension_numbers = #tpu.dot_dimension_numbers<[1], [1], [0], [0], [0, 0, 1, 0], [], []>} : vector<8x8xf32>, vector<8x8xf32>, vector<8x8xf32> -> vector<8x8xf32>
    %178 = tpu.concatenate %168, %171, %174, %177 in 0 : vector<8x8xf32>, vector<8x8xf32>, vector<8x8xf32>, vector<8x8xf32> -> vector<32x8xf32>
    %179 = vector.broadcast %6 : vector<1x8xf32> to vector<32x8xf32>
    %180 = arith.addf %178, %179 : vector<32x8xf32>
    %cst_80 = arith.constant dense<0xFF800000> : vector<32xf32>
    %181 = vector.multi_reduction <maximumf>, %180, %cst_80 [1] : vector<32x8xf32> to vector<32xf32>
    %182 = vector.shape_cast %181 : vector<32xf32> to vector<32x1xf32>
    %183 = vector.broadcast %182 : vector<32x1xf32> to vector<32x8xf32>
    %184 = arith.subf %180, %183 : vector<32x8xf32>
    %185 = math.exp %184 : vector<32x8xf32>
    %cst_81 = arith.constant dense<0.000000e+00> : vector<32xf32>
    %186 = vector.multi_reduction <add>, %185, %cst_81 [1] : vector<32x8xf32> to vector<32xf32>
    %187 = vector.shape_cast %186 : vector<32xf32> to vector<32x1xf32>
    %188 = tpu.reciprocal %187 {approx = true} : vector<32x1xf32> -> vector<32x1xf32>
    %189 = vector.broadcast %188 : vector<32x1xf32> to vector<32x8xf32>
    %190 = arith.mulf %185, %189 : vector<32x8xf32>
    %191 = vector.extract_strided_slice %190 {offsets = [0, 0], sizes = [8, 8], strides = [1, 1]} : vector<32x8xf32> to vector<8x8xf32>
    %192 = vector.extract_strided_slice %165 {offsets = [0, 64], sizes = [8, 8], strides = [1, 1]} : vector<8x128xf32> to vector<8x8xf32>
    %cst_82 = arith.constant dense<0.000000e+00> : vector<8x8xf32>
    %193 = tpu.matmul %191, %192, %cst_82 {dimension_numbers = #tpu.dot_dimension_numbers<[1], [0], [0], [1], [0, 0, 1, 1], [], []>} : vector<8x8xf32>, vector<8x8xf32>, vector<8x8xf32> -> vector<8x8xf32>
    %194 = vector.extract_strided_slice %190 {offsets = [8, 0], sizes = [8, 8], strides = [1, 1]} : vector<32x8xf32> to vector<8x8xf32>
    %195 = vector.extract_strided_slice %165 {offsets = [0, 72], sizes = [8, 8], strides = [1, 1]} : vector<8x128xf32> to vector<8x8xf32>
    %cst_83 = arith.constant dense<0.000000e+00> : vector<8x8xf32>
    %196 = tpu.matmul %194, %195, %cst_83 {dimension_numbers = #tpu.dot_dimension_numbers<[1], [0], [0], [1], [0, 0, 1, 1], [], []>} : vector<8x8xf32>, vector<8x8xf32>, vector<8x8xf32> -> vector<8x8xf32>
    %197 = vector.extract_strided_slice %190 {offsets = [16, 0], sizes = [8, 8], strides = [1, 1]} : vector<32x8xf32> to vector<8x8xf32>
    %198 = vector.extract_strided_slice %165 {offsets = [0, 80], sizes = [8, 8], strides = [1, 1]} : vector<8x128xf32> to vector<8x8xf32>
    %cst_84 = arith.constant dense<0.000000e+00> : vector<8x8xf32>
    %199 = tpu.matmul %197, %198, %cst_84 {dimension_numbers = #tpu.dot_dimension_numbers<[1], [0], [0], [1], [0, 0, 1, 1], [], []>} : vector<8x8xf32>, vector<8x8xf32>, vector<8x8xf32> -> vector<8x8xf32>
    %200 = vector.extract_strided_slice %190 {offsets = [24, 0], sizes = [8, 8], strides = [1, 1]} : vector<32x8xf32> to vector<8x8xf32>
    %201 = vector.extract_strided_slice %165 {offsets = [0, 88], sizes = [8, 8], strides = [1, 1]} : vector<8x128xf32> to vector<8x8xf32>
    %cst_85 = arith.constant dense<0.000000e+00> : vector<8x8xf32>
    %202 = tpu.matmul %200, %201, %cst_85 {dimension_numbers = #tpu.dot_dimension_numbers<[1], [0], [0], [1], [0, 0, 1, 1], [], []>} : vector<8x8xf32>, vector<8x8xf32>, vector<8x8xf32> -> vector<8x8xf32>
    %203 = tpu.concatenate %193, %196, %199, %202 in 1 : vector<8x8xf32>, vector<8x8xf32>, vector<8x8xf32>, vector<8x8xf32> -> vector<8x32xf32>
    %c1_86 = arith.constant 1 : index
    %c0_87 = arith.constant 0 : index
    %c0_88 = arith.constant 0 : index
    %204 = vector.load %arg7[%c1_86, %c0_87, %c0_88] : memref<2x32x32xf32, #tpu.memory_space<vmem>>, vector<1x32x32xf32>
    %205 = vector.shape_cast %204 : vector<1x32x32xf32> to vector<32x32xf32>
    %cst_89 = arith.constant dense<0.000000e+00> : vector<8x32xf32>
    %206 = tpu.matmul %203, %205, %cst_89 {dimension_numbers = #tpu.dot_dimension_numbers<[1], [0], [0], [1], [0, 0, 1, 1], [], []>} : vector<8x32xf32>, vector<32x32xf32>, vector<8x32xf32> -> vector<8x32xf32>
    %c1_90 = arith.constant 1 : index
    %c0_91 = arith.constant 0 : index
    %c0_92 = arith.constant 0 : index
    %207 = vector.load %arg11[%c1_90, %c0_91, %c0_92] : memref<2x1x32xf32, #tpu.memory_space<vmem>>, vector<1x1x32xf32>
    %208 = vector.shape_cast %207 : vector<1x1x32xf32> to vector<1x32xf32>
    %209 = vector.broadcast %208 : vector<1x32xf32> to vector<8x32xf32>
    %210 = arith.addf %206, %209 : vector<8x32xf32>
    %211 = arith.addf %132, %210 : vector<8x32xf32>
    %212 = vector.extract_strided_slice %134 {offsets = [2, 0], sizes = [1, 32], strides = [1, 1]} : vector<4x32xf32> to vector<1x32xf32>
    %213 = vector.extract_strided_slice %134 {offsets = [3, 0], sizes = [1, 32], strides = [1, 1]} : vector<4x32xf32> to vector<1x32xf32>
    %cst_93 = arith.constant dense<0.000000e+00> : vector<8xf32>
    %214 = vector.multi_reduction <add>, %211, %cst_93 [1] : vector<8x32xf32> to vector<8xf32>
    %215 = vector.shape_cast %214 : vector<8xf32> to vector<8x1xf32>
    %cst_94 = arith.constant 3.200000e+01 : f32
    %216 = vector.broadcast %cst_94 : f32 to vector<8x1xf32>
    %217 = arith.divf %215, %216 : vector<8x1xf32>
    %218 = vector.broadcast %217 : vector<8x1xf32> to vector<8x32xf32>
    %219 = arith.subf %211, %218 : vector<8x32xf32>
    %220 = arith.mulf %219, %219 : vector<8x32xf32>
    %cst_95 = arith.constant dense<0.000000e+00> : vector<8xf32>
    %221 = vector.multi_reduction <add>, %220, %cst_95 [1] : vector<8x32xf32> to vector<8xf32>
    %222 = vector.shape_cast %221 : vector<8xf32> to vector<8x1xf32>
    %cst_96 = arith.constant 3.200000e+01 : f32
    %223 = vector.broadcast %cst_96 : f32 to vector<8x1xf32>
    %224 = arith.divf %222, %223 : vector<8x1xf32>
    %225 = vector.broadcast %217 : vector<8x1xf32> to vector<8x32xf32>
    %226 = arith.subf %211, %225 : vector<8x32xf32>
    %cst_97 = arith.constant 9.99999974E-6 : f32
    %227 = vector.broadcast %cst_97 : f32 to vector<8x1xf32>
    %228 = arith.addf %224, %227 : vector<8x1xf32>
    %229 = math.rsqrt %228 : vector<8x1xf32>
    %230 = vector.broadcast %229 : vector<8x1xf32> to vector<8x32xf32>
    %231 = arith.mulf %226, %230 : vector<8x32xf32>
    %232 = vector.broadcast %212 : vector<1x32xf32> to vector<8x32xf32>
    %233 = arith.mulf %231, %232 : vector<8x32xf32>
    %234 = vector.broadcast %213 : vector<1x32xf32> to vector<8x32xf32>
    %235 = arith.addf %233, %234 : vector<8x32xf32>
    %c1_98 = arith.constant 1 : index
    %c0_99 = arith.constant 0 : index
    %c0_100 = arith.constant 0 : index
    %236 = vector.load %arg8[%c1_98, %c0_99, %c0_100] : memref<2x32x128xf32, #tpu.memory_space<vmem>>, vector<1x32x128xf32>
    %237 = vector.shape_cast %236 : vector<1x32x128xf32> to vector<32x128xf32>
    %cst_101 = arith.constant dense<0.000000e+00> : vector<8x128xf32>
    %238 = tpu.matmul %235, %237, %cst_101 {dimension_numbers = #tpu.dot_dimension_numbers<[1], [0], [0], [1], [0, 0, 1, 1], [], []>} : vector<8x32xf32>, vector<32x128xf32>, vector<8x128xf32> -> vector<8x128xf32>
    %c1_102 = arith.constant 1 : index
    %c0_103 = arith.constant 0 : index
    %c0_104 = arith.constant 0 : index
    %239 = vector.load %arg12[%c1_102, %c0_103, %c0_104] : memref<2x1x128xf32, #tpu.memory_space<vmem>>, vector<1x1x128xf32>
    %240 = vector.shape_cast %239 : vector<1x1x128xf32> to vector<1x128xf32>
    %241 = vector.broadcast %240 : vector<1x128xf32> to vector<8x128xf32>
    %242 = arith.addf %238, %241 : vector<8x128xf32>
    %cst_105 = arith.constant 8.510000e-01 : f32
    %243 = vector.broadcast %cst_105 : f32 to vector<8x128xf32>
    %244 = arith.mulf %243, %242 : vector<8x128xf32>
    %245 = math.tanh %244 : vector<8x128xf32>
    %cst_106 = arith.constant 1.000000e+00 : f32
    %246 = vector.broadcast %cst_106 : f32 to vector<8x128xf32>
    %247 = arith.addf %245, %246 : vector<8x128xf32>
    %cst_107 = arith.constant 5.000000e-01 : f32
    %248 = vector.broadcast %cst_107 : f32 to vector<8x128xf32>
    %249 = arith.mulf %248, %247 : vector<8x128xf32>
    %250 = arith.mulf %242, %249 : vector<8x128xf32>
    %c1_108 = arith.constant 1 : index
    %c0_109 = arith.constant 0 : index
    %c0_110 = arith.constant 0 : index
    %251 = vector.load %arg9[%c1_108, %c0_109, %c0_110] : memref<2x128x32xf32, #tpu.memory_space<vmem>>, vector<1x128x32xf32>
    %252 = vector.shape_cast %251 : vector<1x128x32xf32> to vector<128x32xf32>
    %cst_111 = arith.constant dense<0.000000e+00> : vector<8x32xf32>
    %253 = tpu.matmul %250, %252, %cst_111 {dimension_numbers = #tpu.dot_dimension_numbers<[1], [0], [0], [1], [0, 0, 1, 1], [], []>} : vector<8x128xf32>, vector<128x32xf32>, vector<8x32xf32> -> vector<8x32xf32>
    %c1_112 = arith.constant 1 : index
    %c0_113 = arith.constant 0 : index
    %c0_114 = arith.constant 0 : index
    %254 = vector.load %arg13[%c1_112, %c0_113, %c0_114] : memref<2x1x32xf32, #tpu.memory_space<vmem>>, vector<1x1x32xf32>
    %255 = vector.shape_cast %254 : vector<1x1x32xf32> to vector<1x32xf32>
    %256 = vector.broadcast %255 : vector<1x32xf32> to vector<8x32xf32>
    %257 = arith.addf %253, %256 : vector<8x32xf32>
    %258 = arith.addf %211, %257 : vector<8x32xf32>
    %c0_115 = arith.constant 0 : index
    %c0_116 = arith.constant 0 : index
    %c0_117 = arith.constant 0 : index
    %259 = vector.load %arg14[%c0_115, %c0_116, %c0_117] : memref<1x8x32xf32, #tpu.memory_space<vmem>>, vector<1x8x32xf32>
    %260 = vector.shape_cast %259 : vector<1x8x32xf32> to vector<8x32xf32>
    %261 = vector.shape_cast %258 : vector<8x32xf32> to vector<1x8x32xf32>
    tpu.vector_store %arg14[%c0_115, %c0_116, %c0_117], %261 {strides = array<i32>} : memref<1x8x32xf32, #tpu.memory_space<vmem>>, vector<1x8x32xf32>,
    return
  }
  func.func @transform_0(%arg0: i32) -> (i32, i32, i32) {
    %c0_i32 = arith.constant 0 : i32
    %c0_i32_0 = arith.constant 0 : i32
    %c0_i32_1 = arith.constant 0 : i32
    return %arg0, %c0_i32, %c0_i32_0 : i32, i32, i32
  }
  func.func @transform_1(%arg0: i32) -> (i32, i32) {
    %c0_i32 = arith.constant 0 : i32
    %c0_i32_0 = arith.constant 0 : i32
    %c0_i32_1 = arith.constant 0 : i32
    return %c0_i32, %c0_i32_0 : i32, i32
  }
  func.func @transform_2(%arg0: i32) -> (i32, i32) {
    %c0_i32 = arith.constant 0 : i32
    %c0_i32_0 = arith.constant 0 : i32
    %c0_i32_1 = arith.constant 0 : i32
    return %c0_i32, %c0_i32_0 : i32, i32
  }
  func.func @transform_3(%arg0: i32) -> (i32, i32) {
    %c0_i32 = arith.constant 0 : i32
    %c0_i32_0 = arith.constant 0 : i32
    %c0_i32_1 = arith.constant 0 : i32
    return %c0_i32, %c0_i32_0 : i32, i32
  }
  func.func @transform_4(%arg0: i32) -> (i32, i32, i32) {
    %c0_i32 = arith.constant 0 : i32
    %c0_i32_0 = arith.constant 0 : i32
    %c0_i32_1 = arith.constant 0 : i32
    %c0_i32_2 = arith.constant 0 : i32
    return %c0_i32, %c0_i32_0, %c0_i32_1 : i32, i32, i32
  }
  func.func @transform_5(%arg0: i32) -> (i32, i32, i32) {
    %c0_i32 = arith.constant 0 : i32
    %c0_i32_0 = arith.constant 0 : i32
    %c0_i32_1 = arith.constant 0 : i32
    %c0_i32_2 = arith.constant 0 : i32
    return %c0_i32, %c0_i32_0, %c0_i32_1 : i32, i32, i32
  }
  func.func @transform_6(%arg0: i32) -> (i32, i32, i32) {
    %c0_i32 = arith.constant 0 : i32
    %c0_i32_0 = arith.constant 0 : i32
    %c0_i32_1 = arith.constant 0 : i32
    %c0_i32_2 = arith.constant 0 : i32
    return %c0_i32, %c0_i32_0, %c0_i32_1 : i32, i32, i32
  }
  func.func @transform_7(%arg0: i32) -> (i32, i32, i32) {
    %c0_i32 = arith.constant 0 : i32
    %c0_i32_0 = arith.constant 0 : i32
    %c0_i32_1 = arith.constant 0 : i32
    %c0_i32_2 = arith.constant 0 : i32
    return %c0_i32, %c0_i32_0, %c0_i32_1 : i32, i32, i32
  }
  func.func @transform_8(%arg0: i32) -> (i32, i32, i32) {
    %c0_i32 = arith.constant 0 : i32
    %c0_i32_0 = arith.constant 0 : i32
    %c0_i32_1 = arith.constant 0 : i32
    %c0_i32_2 = arith.constant 0 : i32
    return %c0_i32, %c0_i32_0, %c0_i32_1 : i32, i32, i32
  }
  func.func @transform_9(%arg0: i32) -> (i32, i32, i32) {
    %c0_i32 = arith.constant 0 : i32
    %c0_i32_0 = arith.constant 0 : i32
    %c0_i32_1 = arith.constant 0 : i32
    %c0_i32_2 = arith.constant 0 : i32
    return %c0_i32, %c0_i32_0, %c0_i32_1 : i32, i32, i32
  }
  func.func @transform_10(%arg0: i32) -> (i32, i32, i32) {
    %c0_i32 = arith.constant 0 : i32
    %c0_i32_0 = arith.constant 0 : i32
    %c0_i32_1 = arith.constant 0 : i32
    %c0_i32_2 = arith.constant 0 : i32
    return %c0_i32, %c0_i32_0, %c0_i32_1 : i32, i32, i32
  }
  func.func @transform_11(%arg0: i32) -> (i32, i32, i32) {
    %c0_i32 = arith.constant 0 : i32
    %c0_i32_0 = arith.constant 0 : i32
    %c0_i32_1 = arith.constant 0 : i32
    %c0_i32_2 = arith.constant 0 : i32
    return %c0_i32, %c0_i32_0, %c0_i32_1 : i32, i32, i32
  }
  func.func @transform_12(%arg0: i32) -> (i32, i32, i32) {
    %c0_i32 = arith.constant 0 : i32
    %c0_i32_0 = arith.constant 0 : i32
    %c0_i32_1 = arith.constant 0 : i32
    %c0_i32_2 = arith.constant 0 : i32
    return %c0_i32, %c0_i32_0, %c0_i32_1 : i32, i32, i32
  }
  func.func @transform_13(%arg0: i32) -> (i32, i32, i32) {
    %c0_i32 = arith.constant 0 : i32
    %c0_i32_0 = arith.constant 0 : i32
    %c0_i32_1 = arith.constant 0 : i32
    return %arg0, %c0_i32, %c0_i32_0 : i32, i32, i32
  }
}

</mosaic_0001>

<llo_original>
// kernel: vit_forward.1
$region0: #{vit_forward.1}
  #allocation0 [shape = 'u32[]', space=smem, size = 0x4, offset = 0x4, fixed_abs, tag = 'smem constant byte address 0x4 - core index']
  #allocation1 [shape = 'u32[72,128]{1,0:T(1,128)}', space=vmem, size = 0x9000, scoped, tag = 'internal scratch']
  %s0 = inlined_call_operand.vmem [shape: f32[2,8,192], index: 0, kind: input, shape index: {}]
  %s1 = inlined_call_operand.vmem [shape: f32[192,32], index: 1, kind: input, shape index: {}]
  %s2 = inlined_call_operand.vmem [shape: f32[8,32], index: 2, kind: input, shape index: {}]
  %s3 = inlined_call_operand.vmem [shape: f32[1,8], index: 3, kind: input, shape index: {}]
  %s4 = inlined_call_operand.vmem [shape: f32[2,4,32], index: 4, kind: input, shape index: {}]
  %s5 = inlined_call_operand.vmem [shape: f32[2,32,128], index: 5, kind: input, shape index: {}]
  %s6 = inlined_call_operand.vmem [shape: f32[2,32,32], index: 6, kind: input, shape index: {}]
  %s7 = inlined_call_operand.vmem [shape: f32[2,32,128], index: 7, kind: input, shape index: {}]
  %s8 = inlined_call_operand.vmem [shape: f32[2,128,32], index: 8, kind: input, shape index: {}]
  %s9 = inlined_call_operand.vmem [shape: f32[2,1,128], index: 9, kind: input, shape index: {}]
  %s10 = inlined_call_operand.vmem [shape: f32[2,1,32], index: 10, kind: input, shape index: {}]
  %s11 = inlined_call_operand.vmem [shape: f32[2,1,128], index: 11, kind: input, shape index: {}]
  %s12 = inlined_call_operand.vmem [shape: f32[2,1,32], index: 12, kind: input, shape index: {}]
  %s13 = inlined_call_operand.vmem [shape: f32[2,8,32], index: 13, kind: output, shape index: {}]
  %s14 = sld [smem:[#allocation0]]
  $region85: #{vit_forward.1} parent=0
    _
  %s16 = ssub.s32 1, %s14
  %s17 = scalar_select 0, %s16, %s14
  loop: start=0, step=1, limit=4
  $region2: #{vit_forward.1} parent=0 // loop_pre_header
    _
  $region3: #{vit_forward.1} parent=0 // loop_header
    %s19 = sphi 0, %s23
    %p20 = scmp.ge.s32.totalorder %s19, 4
    %s29 = sphi 0, %s31
    %s32 = sphi 0, %s29
    %s33 = sphi 0, %s32
    %s49 = sphi 0, %s33
    %s53 = sphi 0, %s53
    %s55 = sphi 0, %s53
    %s56 = sphi 0, %s55
    %s70 = sphi 0, %s56
    %s74 = sphi 0, %s74
    %s76 = sphi 0, %s74
    %s77 = sphi 0, %s76
    %s91 = sphi 0, %s77
    %s95 = sphi 0, %s95
    %s97 = sphi 0, %s95
    %s98 = sphi 0, %s97
    %s112 = sphi 0, %s98
    %s116 = sphi 0, %s116
    %s118 = sphi 0, %s116
    %s119 = sphi 0, %s118
    %s133 = sphi 0, %s119
    %s137 = sphi 0, %s137
    %s139 = sphi 0, %s137
    %s140 = sphi 0, %s139
    %s154 = sphi 0, %s140
    %s158 = sphi 0, %s158
    %s160 = sphi 0, %s158
    %s161 = sphi 0, %s160
    %s175 = sphi 0, %s161
    %s179 = sphi 0, %s179
    %s181 = sphi 0, %s179
    %s182 = sphi 0, %s181
    %s196 = sphi 0, %s182
    %s200 = sphi 0, %s200
    %s202 = sphi 0, %s200
    %s203 = sphi 0, %s202
    %s217 = sphi 0, %s203
    %s221 = sphi 0, %s221
    %s223 = sphi 0, %s221
    %s224 = sphi 0, %s223
    %s238 = sphi 0, %s224
    %s242 = sphi 0, %s242
    %s244 = sphi 0, %s242
    %s245 = sphi 0, %s244
    %s259 = sphi 0, %s245
    %s263 = sphi 0, %s263
    %s265 = sphi 0, %s263
    %s266 = sphi 0, %s265
    %s280 = sphi 0, %s266
    %s284 = sphi 0, %s284
    %s286 = sphi 0, %s284
    %s287 = sphi 0, %s286
    %s301 = sphi 0, %s287
    %s307 = sphi 0, %s309
    %s310 = sphi 0, %s307
    %s311 = sphi 0, %s310
    %s327 = sphi 0, %s311
  $region4: #{vit_forward.1} parent=0 // loop_header_branch
    %22 = sbr.rel (%p20) target = $region8
  $region5: #{vit_forward.1} parent=0 // loop_body
    %s24 = ssub.s32 %s19, 1
    %s25 = ssub.s32 %s19, 2
    %s26 = sadd.s32 %s19, 1
    %s27 = ssub.s32 %s19, %s26
    %p28 = scmp.eq.s32.totalorder %s27, 0
    %s30 = sadd.s32 %s29, 1
    %s31 = scalar_select %p28, %s29, %s30
    %p34 = pneg %p28
    %p35 = scmp.eq.s32.totalorder %s19, 1
    %p36 = por %p34, %p35
    %p37 = scmp.ne.s32.totalorder %s29, %s32
    %p38 = scmp.eq.s32.totalorder %s19, 0
    %p39 = por %p37, %p38
    %p40 = scmp.ne.s32.totalorder %s29, %s32
    %p41 = scmp.eq.s32.totalorder %s24, 1
    %p42 = por %p40, %p41
    %p43 = scmp.ne.s32.totalorder %s32, %s33
    %p44 = scmp.eq.s32.totalorder %s24, 0
    %p45 = por %p43, %p44
    %p46 = scmp.ne.s32.totalorder %s32, %s33
    %p47 = scmp.eq.s32.totalorder %s25, 1
    %p48 = por %p46, %p47
    %p50 = scmp.ne.s32.totalorder %s33, %s49
    %p51 = scmp.eq.s32.totalorder %s25, 0
    %p52 = por %p50, %p51
    %s54 = sadd.s32 %s53, 1
    %p57 = scmp.eq.s32.totalorder %s19, 1
    %p58 = scmp.ne.s32.totalorder %s53, %s55
    %p59 = scmp.eq.s32.totalorder %s19, 0
    %p60 = por %p58, %p59
    %p61 = scmp.ne.s32.totalorder %s53, %s55
    %p62 = scmp.eq.s32.totalorder %s24, 1
    %p63 = por %p61, %p62
    %p64 = scmp.ne.s32.totalorder %s55, %s56
    %p65 = scmp.eq.s32.totalorder %s24, 0
    %p66 = por %p64, %p65
    %p67 = scmp.ne.s32.totalorder %s55, %s56
    %p68 = scmp.eq.s32.totalorder %s25, 1
    %p69 = por %p67, %p68
    %p71 = scmp.ne.s32.totalorder %s56, %s70
    %p72 = scmp.eq.s32.totalorder %s25, 0
    %p73 = por %p71, %p72
    %s75 = sadd.s32 %s74, 1
    %p78 = scmp.eq.s32.totalorder %s19, 1
    %p79 = scmp.ne.s32.totalorder %s74, %s76
    %p80 = scmp.eq.s32.totalorder %s19, 0
    %p81 = por %p79, %p80
    %p82 = scmp.ne.s32.totalorder %s74, %s76
    %p83 = scmp.eq.s32.totalorder %s24, 1
    %p84 = por %p82, %p83
    %p85 = scmp.ne.s32.totalorder %s76, %s77
    %p86 = scmp.eq.s32.totalorder %s24, 0
    %p87 = por %p85, %p86
    %p88 = scmp.ne.s32.totalorder %s76, %s77
    %p89 = scmp.eq.s32.totalorder %s25, 1
    %p90 = por %p88, %p89
    %p92 = scmp.ne.s32.totalorder %s77, %s91
    %p93 = scmp.eq.s32.totalorder %s25, 0
    %p94 = por %p92, %p93
    %s96 = sadd.s32 %s95, 1
    %p99 = scmp.eq.s32.totalorder %s19, 1
    %p100 = scmp.ne.s32.totalorder %s95, %s97
    %p101 = scmp.eq.s32.totalorder %s19, 0
    %p102 = por %p100, %p101
    %p103 = scmp.ne.s32.totalorder %s95, %s97
    %p104 = scmp.eq.s32.totalorder %s24, 1
    %p105 = por %p103, %p104
    %p106 = scmp.ne.s32.totalorder %s97, %s98
    %p107 = scmp.eq.s32.totalorder %s24, 0
    %p108 = por %p106, %p107
    %p109 = scmp.ne.s32.totalorder %s97, %s98
    %p110 = scmp.eq.s32.totalorder %s25, 1
    %p111 = por %p109, %p110
    %p113 = scmp.ne.s32.totalorder %s98, %s112
    %p114 = scmp.eq.s32.totalorder %s25, 0
    %p115 = por %p113, %p114
    %s117 = sadd.s32 %s116, 1
    %p120 = scmp.eq.s32.totalorder %s19, 1
    %p121 = scmp.ne.s32.totalorder %s116, %s118
    %p122 = scmp.eq.s32.totalorder %s19, 0
    %p123 = por %p121, %p122
    %p124 = scmp.ne.s32.totalorder %s116, %s118
    %p125 = scmp.eq.s32.totalorder %s24, 1
    %p126 = por %p124, %p125
    %p127 = scmp.ne.s32.totalorder %s118, %s119
    %p128 = scmp.eq.s32.totalorder %s24, 0
    %p129 = por %p127, %p128
    %p130 = scmp.ne.s32.totalorder %s118, %s119
    %p131 = scmp.eq.s32.totalorder %s25, 1
    %p132 = por %p130, %p131
    %p134 = scmp.ne.s32.totalorder %s119, %s133
    %p135 = scmp.eq.s32.totalorder %s25, 0
    %p136 = por %p134, %p135
    %s138 = sadd.s32 %s137, 1
    %p141 = scmp.eq.s32.totalorder %s19, 1
    %p142 = scmp.ne.s32.totalorder %s137, %s139
    %p143 = scmp.eq.s32.totalorder %s19, 0
    %p144 = por %p142, %p143
    %p145 = scmp.ne.s32.totalorder %s137, %s139
    %p146 = scmp.eq.s32.totalorder %s24, 1
    %p147 = por %p145, %p146
    %p148 = scmp.ne.s32.totalorder %s139, %s140
    %p149 = scmp.eq.s32.totalorder %s24, 0
    %p150 = por %p148, %p149
    %p151 = scmp.ne.s32.totalorder %s139, %s140
    %p152 = scmp.eq.s32.totalorder %s25, 1
    %p153 = por %p151, %p152
    %p155 = scmp.ne.s32.totalorder %s140, %s154
    %p156 = scmp.eq.s32.totalorder %s25, 0
    %p157 = por %p155, %p156
    %s159 = sadd.s32 %s158, 1
    %p162 = scmp.eq.s32.totalorder %s19, 1
    %p163 = scmp.ne.s32.totalorder %s158, %s160
    %p164 = scmp.eq.s32.totalorder %s19, 0
    %p165 = por %p163, %p164
    %p166 = scmp.ne.s32.totalorder %s158, %s160
    %p167 = scmp.eq.s32.totalorder %s24, 1
    %p168 = por %p166, %p167
    %p169 = scmp.ne.s32.totalorder %s160, %s161
    %p170 = scmp.eq.s32.totalorder %s24, 0
    %p171 = por %p169, %p170
    %p172 = scmp.ne.s32.totalorder %s160, %s161
    %p173 = scmp.eq.s32.totalorder %s25, 1
    %p174 = por %p172, %p173
    %p176 = scmp.ne.s32.totalorder %s161, %s175
    %p177 = scmp.eq.s32.totalorder %s25, 0
    %p178 = por %p176, %p177
    %s180 = sadd.s32 %s179, 1
    %p183 = scmp.eq.s32.totalorder %s19, 1
    %p184 = scmp.ne.s32.totalorder %s179, %s181
    %p185 = scmp.eq.s32.totalorder %s19, 0
    %p186 = por %p184, %p185
    %p187 = scmp.ne.s32.totalorder %s179, %s181
    %p188 = scmp.eq.s32.totalorder %s24, 1
    %p189 = por %p187, %p188
    %p190 = scmp.ne.s32.totalorder %s181, %s182
    %p191 = scmp.eq.s32.totalorder %s24, 0
    %p192 = por %p190, %p191
    %p193 = scmp.ne.s32.totalorder %s181, %s182
    %p194 = scmp.eq.s32.totalorder %s25, 1
    %p195 = por %p193, %p194
    %p197 = scmp.ne.s32.totalorder %s182, %s196
    %p198 = scmp.eq.s32.totalorder %s25, 0
    %p199 = por %p197, %p198
    %s201 = sadd.s32 %s200, 1
    %p204 = scmp.eq.s32.totalorder %s19, 1
    %p205 = scmp.ne.s32.totalorder %s200, %s202
    %p206 = scmp.eq.s32.totalorder %s19, 0
    %p207 = por %p205, %p206
    %p208 = scmp.ne.s32.totalorder %s200, %s202
    %p209 = scmp.eq.s32.totalorder %s24, 1
    %p210 = por %p208, %p209
    %p211 = scmp.ne.s32.totalorder %s202, %s203
    %p212 = scmp.eq.s32.totalorder %s24, 0
    %p213 = por %p211, %p212
    %p214 = scmp.ne.s32.totalorder %s202, %s203
    %p215 = scmp.eq.s32.totalorder %s25, 1
    %p216 = por %p214, %p215
    %p218 = scmp.ne.s32.totalorder %s203, %s217
    %p219 = scmp.eq.s32.totalorder %s25, 0
    %p220 = por %p218, %p219
    %s222 = sadd.s32 %s221, 1
    %p225 = scmp.eq.s32.totalorder %s19, 1
    %p226 = scmp.ne.s32.totalorder %s221, %s223
    %p227 = scmp.eq.s32.totalorder %s19, 0
    %p228 = por %p226, %p227
    %p229 = scmp.ne.s32.totalorder %s221, %s223
    %p230 = scmp.eq.s32.totalorder %s24, 1
    %p231 = por %p229, %p230
    %p232 = scmp.ne.s32.totalorder %s223, %s224
    %p233 = scmp.eq.s32.totalorder %s24, 0
    %p234 = por %p232, %p233
    %p235 = scmp.ne.s32.totalorder %s223, %s224
    %p236 = scmp.eq.s32.totalorder %s25, 1
    %p237 = por %p235, %p236
    %p239 = scmp.ne.s32.totalorder %s224, %s238
    %p240 = scmp.eq.s32.totalorder %s25, 0
    %p241 = por %p239, %p240
    %s243 = sadd.s32 %s242, 1
    %p246 = scmp.eq.s32.totalorder %s19, 1
    %p247 = scmp.ne.s32.totalorder %s242, %s244
    %p248 = scmp.eq.s32.totalorder %s19, 0
    %p249 = por %p247, %p248
    %p250 = scmp.ne.s32.totalorder %s242, %s244
    %p251 = scmp.eq.s32.totalorder %s24, 1
    %p252 = por %p250, %p251
    %p253 = scmp.ne.s32.totalorder %s244, %s245
    %p254 = scmp.eq.s32.totalorder %s24, 0
    %p255 = por %p253, %p254
    %p256 = scmp.ne.s32.totalorder %s244, %s245
    %p257 = scmp.eq.s32.totalorder %s25, 1
    %p258 = por %p256, %p257
    %p260 = scmp.ne.s32.totalorder %s245, %s259
    %p261 = scmp.eq.s32.totalorder %s25, 0
    %p262 = por %p260, %p261
    %s264 = sadd.s32 %s263, 1
    %p267 = scmp.eq.s32.totalorder %s19, 1
    %p268 = scmp.ne.s32.totalorder %s263, %s265
    %p269 = scmp.eq.s32.totalorder %s19, 0
    %p270 = por %p268, %p269
    %p271 = scmp.ne.s32.totalorder %s263, %s265
    %p272 = scmp.eq.s32.totalorder %s24, 1
    %p273 = por %p271, %p272
    %p274 = scmp.ne.s32.totalorder %s265, %s266
    %p275 = scmp.eq.s32.totalorder %s24, 0
    %p276 = por %p274, %p275
    %p277 = scmp.ne.s32.totalorder %s265, %s266
    %p278 = scmp.eq.s32.totalorder %s25, 1
    %p279 = por %p277, %p278
    %p281 = scmp.ne.s32.totalorder %s266, %s280
    %p282 = scmp.eq.s32.totalorder %s25, 0
    %p283 = por %p281, %p282
    %s285 = sadd.s32 %s284, 1
    %p288 = scmp.eq.s32.totalorder %s19, 1
    %p289 = scmp.ne.s32.totalorder %s284, %s286
    %p290 = scmp.eq.s32.totalorder %s19, 0
    %p291 = por %p289, %p290
    %p292 = scmp.ne.s32.totalorder %s284, %s286
    %p293 = scmp.eq.s32.totalorder %s24, 1
    %p294 = por %p292, %p293
    %p295 = scmp.ne.s32.totalorder %s286, %s287
    %p296 = scmp.eq.s32.totalorder %s24, 0
    %p297 = por %p295, %p296
    %p298 = scmp.ne.s32.totalorder %s286, %s287
    %p299 = scmp.eq.s32.totalorder %s25, 1
    %p300 = por %p298, %p299
    %p302 = scmp.ne.s32.totalorder %s287, %s301
    %p303 = scmp.eq.s32.totalorder %s25, 0
    %p304 = por %p302, %p303
    %s305 = ssub.s32 %s19, %s26
    %p306 = scmp.eq.s32.totalorder %s305, 0
    %s308 = sadd.s32 %s307, 1
    %s309 = scalar_select %p306, %s307, %s308
    %p312 = pneg %p306
    %p313 = scmp.eq.s32.totalorder %s19, 1
    %p314 = por %p312, %p313
    %p315 = scmp.ne.s32.totalorder %s307, %s310
    %p316 = scmp.eq.s32.totalorder %s19, 0
    %p317 = por %p315, %p316
    %p318 = scmp.ne.s32.totalorder %s307, %s310
    %p319 = scmp.eq.s32.totalorder %s24, 1
    %p320 = por %p318, %p319
    %p321 = scmp.ne.s32.totalorder %s310, %s311
    %p322 = scmp.eq.s32.totalorder %s24, 0
    %p323 = por %p321, %p322
    %p324 = scmp.ne.s32.totalorder %s310, %s311
    %p325 = scmp.eq.s32.totalorder %s25, 1
    %p326 = por %p324, %p325
    %p328 = scmp.ne.s32.totalorder %s311, %s327
    %p329 = scmp.eq.s32.totalorder %s25, 0
    %p330 = por %p328, %p329
    %p331 = scmp.le.s32.totalorder 1, %s19
    %p332 = scmp.lt.s32.totalorder %s19, 3
    %p333 = pnand %p331, %p332
    %p334 = pneg %p333
    // Predicated region
    $region9: #{vit_forward.1} parent=5 // pred_check
      _
    $region10: #{vit_forward.1} parent=5 // pred_check_branch
      %336 = sbr.rel (%p333) target = $region12
    $region11: #{vit_forward.1} parent=5 // pred_region
      %s337 = ssub.s32 %s19, 1
      // Predicated region
      $region13: #{vit_forward.1} parent=11 // pred_check
        %p338 = pneg %p66
      $region14: #{vit_forward.1} parent=11 // pred_check_branch
        %340 = sbr.rel (%p338) target = $region16
      $region15: #{vit_forward.1} parent=11 // pred_region
        _
      $region16: #{vit_forward.1} parent=11 // pred_fallthru
        _
      // Predicated region
      $region17: #{vit_forward.1} parent=11 // pred_check
        %p341 = pneg %p87
      $region18: #{vit_forward.1} parent=11 // pred_check_branch
        %343 = sbr.rel (%p341) target = $region20
      $region19: #{vit_forward.1} parent=11 // pred_region
        _
      $region20: #{vit_forward.1} parent=11 // pred_fallthru
        _
      // Predicated region
      $region21: #{vit_forward.1} parent=11 // pred_check
        %p344 = pneg %p108
      $region22: #{vit_forward.1} parent=11 // pred_check_branch
        %346 = sbr.rel (%p344) target = $region24
      $region23: #{vit_forward.1} parent=11 // pred_region
        _
      $region24: #{vit_forward.1} parent=11 // pred_fallthru
        _
      // Predicated region
      $region25: #{vit_forward.1} parent=11 // pred_check
        %p347 = pneg %p129
      $region26: #{vit_forward.1} parent=11 // pred_check_branch
        %349 = sbr.rel (%p347) target = $region28
      $region27: #{vit_forward.1} parent=11 // pred_region
        _
      $region28: #{vit_forward.1} parent=11 // pred_fallthru
        _
      // Predicated region
      $region29: #{vit_forward.1} parent=11 // pred_check
        %p350 = pneg %p150
      $region30: #{vit_forward.1} parent=11 // pred_check_branch
        %352 = sbr.rel (%p350) target = $region32
      $region31: #{vit_forward.1} parent=11 // pred_region
        _
      $region32: #{vit_forward.1} parent=11 // pred_fallthru
        _
      // Predicated region
      $region33: #{vit_forward.1} parent=11 // pred_check
        %p353 = pneg %p171
      $region34: #{vit_forward.1} parent=11 // pred_check_branch
        %355 = sbr.rel (%p353) target = $region36
      $region35: #{vit_forward.1} parent=11 // pred_region
        _
      $region36: #{vit_forward.1} parent=11 // pred_fallthru
        _
      // Predicated region
      $region37: #{vit_forward.1} parent=11 // pred_check
        %p356 = pneg %p192
      $region38: #{vit_forward.1} parent=11 // pred_check_branch
        %358 = sbr.rel (%p356) target = $region40
      $region39: #{vit_forward.1} parent=11 // pred_region
        _
      $region40: #{vit_forward.1} parent=11 // pred_fallthru
        _
      // Predicated region
      $region41: #{vit_forward.1} parent=11 // pred_check
        %p359 = pneg %p213
      $region42: #{vit_forward.1} parent=11 // pred_check_branch
        %361 = sbr.rel (%p359) target = $region44
      $region43: #{vit_forward.1} parent=11 // pred_region
        _
      $region44: #{vit_forward.1} parent=11 // pred_fallthru
        _
      // Predicated region
      $region45: #{vit_forward.1} parent=11 // pred_check
        %p362 = pneg %p234
      $region46: #{vit_forward.1} parent=11 // pred_check_branch
        %364 = sbr.rel (%p362) target = $region48
      $region47: #{vit_forward.1} parent=11 // pred_region
        _
      $region48: #{vit_forward.1} parent=11 // pred_fallthru
        _
      // Predicated region
      $region49: #{vit_forward.1} parent=11 // pred_check
        %p365 = pneg %p255
      $region50: #{vit_forward.1} parent=11 // pred_check_branch
        %367 = sbr.rel (%p365) target = $region52
      $region51: #{vit_forward.1} parent=11 // pred_region
        _
      $region52: #{vit_forward.1} parent=11 // pred_fallthru
        _
      // Predicated region
      $region53: #{vit_forward.1} parent=11 // pred_check
        %p368 = pneg %p276
      $region54: #{vit_forward.1} parent=11 // pred_check_branch
        %370 = sbr.rel (%p368) target = $region56
      $region55: #{vit_forward.1} parent=11 // pred_region
        _
      $region56: #{vit_forward.1} parent=11 // pred_fallthru
        _
      // Predicated region
      $region57: #{vit_forward.1} parent=11 // pred_check
        %p371 = pneg %p297
      $region58: #{vit_forward.1} parent=11 // pred_check_branch
        %373 = sbr.rel (%p371) target = $region60
      $region59: #{vit_forward.1} parent=11 // pred_region
        _
      $region60: #{vit_forward.1} parent=11 // pred_fallthru
        _
    $region12: #{vit_forward.1} parent=5 // pred_fallthru
      _
    %p374 = scmp.lt.s32.totalorder %s19, 2
    // Predicated region
    $region61: #{vit_forward.1} parent=5 // pred_check
      %p375 = pneg %p374
    $region62: #{vit_forward.1} parent=5 // pred_check_branch
      %377 = sbr.rel (%p375) target = $region64
    $region63: #{vit_forward.1} parent=5 // pred_region
      // Predicated region
      $region65: #{vit_forward.1} parent=63 // pred_check
        %p378 = pneg %p39
      $region66: #{vit_forward.1} parent=63 // pred_check_branch
        %380 = sbr.rel (%p378) target = $region68
      $region67: #{vit_forward.1} parent=63 // pred_region
        %p381 = scmp.lt.s32.totalorder %s19, 1
        %s382 = scalar_select %p381, %s19, 1
        %s383 = smul.addr %s382, 2
        %s384 = smul.addr %s383, 8
        %s385 = scalar_lea.vmem %s0, %s384
      $region68: #{vit_forward.1} parent=63 // pred_fallthru
        _
    $region64: #{vit_forward.1} parent=5 // pred_fallthru
      _
    %p386 = scmp.le.s32.totalorder 1, %s19
    %p387 = scmp.lt.s32.totalorder %s19, 3
    %p388 = pnand %p386, %p387
    %p389 = pneg %p388
    // Predicated region
    $region69: #{vit_forward.1} parent=5 // pred_check
      _
    $region70: #{vit_forward.1} parent=5 // pred_check_branch
      %391 = sbr.rel (%p388) target = $region72
    $region71: #{vit_forward.1} parent=5 // pred_region
      %s392 = ssub.s32 %s19, 1
      %p393 = scmp.lt.s32.totalorder %s24, 1
      %s394 = scalar_select %p393, %s24, 1
      %s395 = smul.addr %s394, 2
      %s396 = smul.addr %s395, 8
      %s397 = scalar_lea.vmem %s0, %s396
      %p398 = pneg %p45
      %p399 = pneg %p42
      %p400 = pneg %p66
      %p401 = pneg %p63
      %p402 = pneg %p87
      %p403 = pneg %p84
      %p404 = pneg %p108
      %p405 = pneg %p105
      %p406 = pneg %p129
      %p407 = pneg %p126
      %p408 = pneg %p150
      %p409 = pneg %p147
      %p410 = pneg %p171
      %p411 = pneg %p168
      %p412 = pneg %p192
      %p413 = pneg %p189
      %p414 = pneg %p213
      %p415 = pneg %p210
      %p416 = pneg %p234
      %p417 = pneg %p231
      %p418 = pneg %p255
      %p419 = pneg %p252
      %p420 = pneg %p276
      %p421 = pneg %p273
      %p422 = pneg %p297
      %p423 = pneg %p294
      %p424 = pneg %p323
      %p425 = pneg %p320
      %p426 = scmp.lt.s32.totalorder %s24, 1
      %s427 = scalar_select %p426, %s24, 1
      %s428 = smul.addr %s427, 8
      %s429 = scalar_lea.vmem %s13, %s428
      %p430 = scmp.lt.s32.totalorder %s24, 1
      %s431 = scalar_select %p430, %s24, 1
      %s432 = smul.addr %s431, 2
      %s433 = smul.addr %s432, 8
      %s434 = scalar_lea.vmem %s0, %s433
      %p435 = scmp.lt.s32.totalorder %s24, 1
      %s436 = scalar_select %p435, %s24, 1
      %s437 = smul.addr %s436, 8
      %s438 = scalar_lea.vmem %s13, %s437
      %v439 = vld [vmem:[%s434] sm:$0xff]
      %v440 = vld [vmem:[%s434 + $0x8] sm:$0xff]
      %v441 = vld [vmem:[%s1] sm:$0xff]
      %v442 = vld [vmem:[%s1 + $0x8] sm:$0xff]
      %v443 = vld [vmem:[%s1 + $0x10] sm:$0xff]
      %v444 = vld [vmem:[%s1 + $0x18] sm:$0xff]
      %v445 = vld [vmem:[%s1 + $0x20] sm:$0xff]
      %v446 = vld [vmem:[%s1 + $0x28] sm:$0xff]
      %v447 = vld [vmem:[%s1 + $0x30] sm:$0xff]
      %v448 = vld [vmem:[%s1 + $0x38] sm:$0xff]
      %v449 = vld [vmem:[%s1 + $0x40] sm:$0xff]
      %v450 = vld [vmem:[%s1 + $0x48] sm:$0xff]
      %v451 = vld [vmem:[%s1 + $0x50] sm:$0xff]
      %v452 = vld [vmem:[%s1 + $0x58] sm:$0xff]
      %v453 = vld [vmem:[%s1 + $0x60] sm:$0xff]
      %v454 = vld [vmem:[%s1 + $0x68] sm:$0xff]
      %v455 = vld [vmem:[%s1 + $0x70] sm:$0xff]
      %v456 = vld [vmem:[%s1 + $0x78] sm:$0xff]
      %v457 = vld [vmem:[%s1 + $0x80] sm:$0xff]
      %v458 = vld [vmem:[%s1 + $0x88] sm:$0xff]
      %v459 = vld [vmem:[%s1 + $0x90] sm:$0xff]
      %v460 = vld [vmem:[%s1 + $0x98] sm:$0xff]
      %v461 = vld [vmem:[%s1 + $0xa0] sm:$0xff]
      %v462 = vld [vmem:[%s1 + $0xa8] sm:$0xff]
      %v463 = vld [vmem:[%s1 + $0xb0] sm:$0xff]
      %v464 = vld [vmem:[%s1 + $0xb8] sm:$0xff]
      %v465 = vld [vmem:[%s2] sm:$0xff]
      %vm466 = vcmask 523264
      %v468 = vsel %vm466, %v440, 0
      %470 = vmatpush.msra.mxu0 %v456
      %471 = vmatpush.msra.mxu0 %v455
      %472 = vmatpush.msra.mxu0 %v454
      %473 = vmatpush.msra.mxu0 %v453
      %474 = vmatpush.msra.mxu0 %v452
      %475 = vmatpush.msra.mxu0 %v451
      %476 = vmatpush.msra.mxu0 %v450
      %477 = vmatpush.msra.mxu0 %v449
      %478 = vmatpush.msra.mxu0 %v448
      %479 = vmatpush.msra.mxu0 %v447
      %480 = vmatpush.msra.mxu0 %v446
      %481 = vmatpush.msra.mxu0 %v445
      %482 = vmatpush.msra.mxu0 %v444
      %483 = vmatpush.msra.mxu0 %v443
      %484 = vmatpush.msra.mxu0 %v442
      %485 = vmatpush.msra.mxu0 %v441
      %486 = vmatmul.f32.gmra.mxu0 %v439
      %v487 = vpop.f32.mrf.mxu0
      %v488 = vadd.f32 %v465, %v487
      %489 = vdwg.mxu0
      %490 = vmatpush.msra.mxu0 0.0
      %491 = vmatpush.msra.mxu0 0.0
      %492 = vmatpush.msra.mxu0 0.0
      %493 = vmatpush.msra.mxu0 0.0
      %494 = vmatpush.msra.mxu0 0.0
      %495 = vmatpush.msra.mxu0 0.0
      %496 = vmatpush.msra.mxu0 0.0
      %497 = vmatpush.msra.mxu0 0.0
      %498 = vmatpush.msra.mxu0 %v464
      %499 = vmatpush.msra.mxu0 %v463
      %500 = vmatpush.msra.mxu0 %v462
      %501 = vmatpush.msra.mxu0 %v461
      %502 = vmatpush.msra.mxu0 %v460
      %503 = vmatpush.msra.mxu0 %v459
      %504 = vmatpush.msra.mxu0 %v458
      %505 = vmatpush.msra.mxu0 %v457
      %506 = vmatmul.f32.gmra.mxu0 %v468
      %v507 = vpop.f32.mrf.mxu0
      %v508 = vadd.f32 %v488, %v507
      %509 = vdwg.mxu0
      %v510 = vld [vmem:[%s3] sm:$0x1]
      %v511 = vld [vmem:[%s4] sm:$0xf]
      %vm512 = vcmask 261120
      %v513 = vsel %vm512, %v508, 0.0
      %514 = vadd.xlane.f32.xlu0 %v513
      %v515 = vpop.xlane.xlu0 %514
      %v516 = vrcp.pop 32.0
      %v517 = vmul.f32 32.0, %v516
      %v518 = vsub.f32 1.0, %v517
      %v519 = vmul.f32 %v516, %v518
      %v520 = vadd.f32 %v516, %v519
      %vm521 = vweird.f32 %v516
      %v522 = vsel %vm521, %v516, %v520
      %v523 = vmul.f32 %v515, %v522
      %v524 = vsub.f32 %v508, %v523
      %v525 = vmul.f32 %v524, %v524
      %v526 = vsel %vm512, %v525, 0.0
      %527 = vadd.xlane.f32.xlu0 %v526
      %v528 = vpop.xlane.xlu0 %527
      %v529 = vmul.f32 %v528, %v522
      %v530 = vadd.f32 %v529, 1e-05
      %v531 = vrsqrt.pop %v530
      %v532 = vmul.f32 %v531, %v530
      %v533 = vmul.f32 %v532, %v531
      %v534 = vmul.f32 0.5, %v533
      %v535 = vsub.f32 1.5, %v534
      %v536 = vmul.f32 %v531, %v535
      %vm537 = vweird.f32 %v530
      %vm538 = vweird.f32 %v531
      %vm539 = vmor %vm537, %vm538
      %v540 = vsel %vm539, %v531, %v536
      %v541 = vmul.f32 %v524, %v540
      %v542 = vperm.slane %v511, 0
      %v543 = vmul.f32 %v541, %v542
      %v544 = vperm.slane %v511, 1
      %v545 = vadd.f32 %v543, %v544
      %v546 = vld [vmem:[%s5] sm:$0xff]
      %v547 = vld [vmem:[%s5 + $0x8] sm:$0xff]
      %v548 = vld [vmem:[%s5 + $0x10] sm:$0xff]
      %v549 = vld [vmem:[%s5 + $0x18] sm:$0xff]
      %v550 = vld [vmem:[%s9] sm:$0x1]
      %v552 = vperm.slane %v550, 0
      %v555 = vsel %vm512, %v545, 0
      %557 = vmatpush.msra.mxu0 0.0
      %558 = vmatpush.msra.mxu0 0.0
      %559 = vmatpush.msra.mxu0 0.0
      %560 = vmatpush.msra.mxu0 0.0
      %561 = vmatpush.msra.mxu0 0.0
      %562 = vmatpush.msra.mxu0 0.0
      %563 = vmatpush.msra.mxu0 0.0
      %564 = vmatpush.msra.mxu0 0.0
      %565 = vmatpush.msra.mxu0 0.0
      %566 = vmatpush.msra.mxu0 0.0
      %567 = vmatpush.msra.mxu0 0.0
      %568 = vmatpush.msra.mxu0 0.0
      %569 = vmatpush.msra.mxu0 %v549
      %570 = vmatpush.msra.mxu0 %v548
      %571 = vmatpush.msra.mxu0 %v547
      %572 = vmatpush.msra.mxu0 %v546
      %573 = vmatmul.f32.gmra.mxu0 %v555
      %v574 = vpop.f32.mrf.mxu0
      %v575 = vadd.f32 %v552, %v574
      %576 = vdwg.mxu0
      %578 = vrot.lane.b32.xlu0 %v575, 96
      %v579 = vpop.permute.xlu0 %578
      %vm580 = vcmask 64512
      %v581 = vsel %vm580, %v575, 0
      %v583 = vsel %vm580, %v579, 0
      %585 = vmatpush.xpose.msra.mxu0 0.0
      %586 = vmatpush.xpose.msra.mxu0 0.0
      %587 = vmatpush.xpose.msra.mxu0 0.0
      %588 = vmatpush.xpose.msra.mxu0 0.0
      %589 = vmatpush.xpose.msra.mxu0 0.0
      %590 = vmatpush.xpose.msra.mxu0 0.0
      %591 = vmatpush.xpose.msra.mxu0 0.0
      %592 = vmatpush.xpose.msra.mxu0 0.0
      %593 = vmatpush.xpose.msra.mxu0 0.0
      %594 = vmatpush.xpose.msra.mxu0 0.0
      %595 = vmatpush.xpose.msra.mxu0 0.0
      %596 = vmatpush.xpose.msra.mxu0 0.0
      %597 = vmatpush.xpose.msra.mxu0 0.0
      %598 = vmatpush.xpose.msra.mxu0 0.0
      %599 = vmatpush.xpose.msra.mxu0 0.0
      %600 = vmatpush.xpose.msra.mxu0 %v583
      %601 = vmatmul.f32.gmra.mxu0 %v581
      %v602 = vpop.f32.mrf.mxu0
      %v603 = vadd.f32 0.0, %v602
      %604 = vdwg.mxu0
      %605 = vrot.lane.b32.xlu0 %v575, 120
      %v606 = vpop.permute.xlu0 %605
      %607 = vrot.lane.b32.xlu0 %v575, 88
      %v608 = vpop.permute.xlu0 %607
      %v609 = vsel %vm580, %v606, 0
      %v611 = vsel %vm580, %v608, 0
      %613 = vmatpush.xpose.msra.mxu0 0.0
      %614 = vmatpush.xpose.msra.mxu0 0.0
      %615 = vmatpush.xpose.msra.mxu0 0.0
      %616 = vmatpush.xpose.msra.mxu0 0.0
      %617 = vmatpush.xpose.msra.mxu0 0.0
      %618 = vmatpush.xpose.msra.mxu0 0.0
      %619 = vmatpush.xpose.msra.mxu0 0.0
      %620 = vmatpush.xpose.msra.mxu0 0.0
      %621 = vmatpush.xpose.msra.mxu0 0.0
      %622 = vmatpush.xpose.msra.mxu0 0.0
      %623 = vmatpush.xpose.msra.mxu0 0.0
      %624 = vmatpush.xpose.msra.mxu0 0.0
      %625 = vmatpush.xpose.msra.mxu0 0.0
      %626 = vmatpush.xpose.msra.mxu0 0.0
      %627 = vmatpush.xpose.msra.mxu0 0.0
      %628 = vmatpush.xpose.msra.mxu0 %v611
      %629 = vmatmul.f32.gmra.mxu0 %v609
      %v630 = vpop.f32.mrf.mxu0
      %v631 = vadd.f32 0.0, %v630
      %632 = vdwg.mxu0
      %633 = vrot.lane.b32.xlu0 %v575, 112
      %v634 = vpop.permute.xlu0 %633
      %635 = vrot.lane.b32.xlu0 %v575, 80
      %v636 = vpop.permute.xlu0 %635
      %v637 = vsel %vm580, %v634, 0
      %v639 = vsel %vm580, %v636, 0
      %641 = vmatpush.xpose.msra.mxu0 0.0
      %642 = vmatpush.xpose.msra.mxu0 0.0
      %643 = vmatpush.xpose.msra.mxu0 0.0
      %644 = vmatpush.xpose.msra.mxu0 0.0
      %645 = vmatpush.xpose.msra.mxu0 0.0
      %646 = vmatpush.xpose.msra.mxu0 0.0
      %647 = vmatpush.xpose.msra.mxu0 0.0
      %648 = vmatpush.xpose.msra.mxu0 0.0
      %649 = vmatpush.xpose.msra.mxu0 0.0
      %650 = vmatpush.xpose.msra.mxu0 0.0
      %651 = vmatpush.xpose.msra.mxu0 0.0
      %652 = vmatpush.xpose.msra.mxu0 0.0
      %653 = vmatpush.xpose.msra.mxu0 0.0
      %654 = vmatpush.xpose.msra.mxu0 0.0
      %655 = vmatpush.xpose.msra.mxu0 0.0
      %656 = vmatpush.xpose.msra.mxu0 %v639
      %657 = vmatmul.f32.gmra.mxu0 %v637
      %v658 = vpop.f32.mrf.mxu0
      %v659 = vadd.f32 0.0, %v658
      %660 = vdwg.mxu0
      %661 = vrot.lane.b32.xlu0 %v575, 104
      %v662 = vpop.permute.xlu0 %661
      %663 = vrot.lane.b32.xlu0 %v575, 72
      %v664 = vpop.permute.xlu0 %663
      %v665 = vsel %vm580, %v662, 0
      %v667 = vsel %vm580, %v664, 0
      %669 = vmatpush.xpose.msra.mxu0 0.0
      %670 = vmatpush.xpose.msra.mxu0 0.0
      %671 = vmatpush.xpose.msra.mxu0 0.0
      %672 = vmatpush.xpose.msra.mxu0 0.0
      %673 = vmatpush.xpose.msra.mxu0 0.0
      %674 = vmatpush.xpose.msra.mxu0 0.0
      %675 = vmatpush.xpose.msra.mxu0 0.0
      %676 = vmatpush.xpose.msra.mxu0 0.0
      %677 = vmatpush.xpose.msra.mxu0 0.0
      %678 = vmatpush.xpose.msra.mxu0 0.0
      %679 = vmatpush.xpose.msra.mxu0 0.0
      %680 = vmatpush.xpose.msra.mxu0 0.0
      %681 = vmatpush.xpose.msra.mxu0 0.0
      %682 = vmatpush.xpose.msra.mxu0 0.0
      %683 = vmatpush.xpose.msra.mxu0 0.0
      %684 = vmatpush.xpose.msra.mxu0 %v667
      %685 = vmatmul.f32.gmra.mxu0 %v665
      %v686 = vpop.f32.mrf.mxu0
      %v687 = vadd.f32 0.0, %v686
      %688 = vdwg.mxu0
      %v690 = vperm.slane %v510, 0
      %v692 = vadd.f32 %v603, %v690
      %v693 = vadd.f32 %v631, %v690
      %v694 = vadd.f32 %v659, %v690
      %v695 = vadd.f32 %v687, %v690
      %v696 = vsel %vm580, %v692, -inf
      %697 = vmax.xlane.f32.xlu0 %v696
      %v698 = vpop.xlane.xlu0 %697
      %v699 = vsel %vm580, %v693, -inf
      %700 = vmax.xlane.f32.xlu0 %v699
      %v701 = vpop.xlane.xlu0 %700
      %v702 = vsel %vm580, %v694, -inf
      %703 = vmax.xlane.f32.xlu0 %v702
      %v704 = vpop.xlane.xlu0 %703
      %v705 = vsel %vm580, %v695, -inf
      %706 = vmax.xlane.f32.xlu0 %v705
      %v707 = vpop.xlane.xlu0 %706
      %v708 = vsub.f32 %v692, %v698
      %v709 = vsub.f32 %v693, %v701
      %v710 = vsub.f32 %v694, %v704
      %v711 = vsub.f32 %v695, %v707
      %v712 = vmul.f32 %v708, 1.442695
      %v713 = vpow.pop %v712
      %v714 = vmul.f32 %v709, 1.442695
      %v715 = vpow.pop %v714
      %v716 = vmul.f32 %v710, 1.442695
      %v717 = vpow.pop %v716
      %v718 = vmul.f32 %v711, 1.442695
      %v719 = vpow.pop %v718
      %v720 = vsel %vm580, %v713, 0.0
      %721 = vadd.xlane.f32.xlu0 %v720
      %v722 = vpop.xlane.xlu0 %721
      %v723 = vsel %vm580, %v715, 0.0
      %724 = vadd.xlane.f32.xlu0 %v723
      %v725 = vpop.xlane.xlu0 %724
      %v726 = vsel %vm580, %v717, 0.0
      %727 = vadd.xlane.f32.xlu0 %v726
      %v728 = vpop.xlane.xlu0 %727
      %v729 = vsel %vm580, %v719, 0.0
      %730 = vadd.xlane.f32.xlu0 %v729
      %v731 = vpop.xlane.xlu0 %730
      %v732 = vrcp.pop %v722
      %v733 = vrcp.pop %v725
      %v734 = vrcp.pop %v728
      %v735 = vrcp.pop %v731
      %v736 = vmul.f32 %v713, %v732
      %v737 = vmul.f32 %v715, %v733
      %v738 = vmul.f32 %v717, %v734
      %v739 = vmul.f32 %v719, %v735
      %740 = vrot.lane.b32.xlu0 %v575, 64
      %v741 = vpop.permute.xlu0 %740
      %v744 = vsel %vm580, %v736, 0
      %746 = vmatpush.msra.mxu0 0.0
      %747 = vmatpush.msra.mxu0 0.0
      %748 = vmatpush.msra.mxu0 0.0
      %749 = vmatpush.msra.mxu0 0.0
      %750 = vmatpush.msra.mxu0 0.0
      %751 = vmatpush.msra.mxu0 0.0
      %752 = vmatpush.msra.mxu0 0.0
      %753 = vmatpush.msra.mxu0 0.0
      %754 = vmatpush.msra.mxu0 0.0
      %755 = vmatpush.msra.mxu0 0.0
      %756 = vmatpush.msra.mxu0 0.0
      %757 = vmatpush.msra.mxu0 0.0
      %758 = vmatpush.msra.mxu0 0.0
      %759 = vmatpush.msra.mxu0 0.0
      %760 = vmatpush.msra.mxu0 0.0
      %761 = vmatpush.msra.mxu0 %v741
      %762 = vmatmul.f32.gmra.mxu0 %v744
      %v763 = vpop.f32.mrf.mxu0
      %v764 = vadd.f32 0.0, %v763
      %765 = vdwg.mxu0
      %766 = vrot.lane.b32.xlu0 %v575, 56
      %v767 = vpop.permute.xlu0 %766
      %v770 = vsel %vm580, %v737, 0
      %772 = vmatpush.msra.mxu0 0.0
      %773 = vmatpush.msra.mxu0 0.0
      %774 = vmatpush.msra.mxu0 0.0
      %775 = vmatpush.msra.mxu0 0.0
      %776 = vmatpush.msra.mxu0 0.0
      %777 = vmatpush.msra.mxu0 0.0
      %778 = vmatpush.msra.mxu0 0.0
      %779 = vmatpush.msra.mxu0 0.0
      %780 = vmatpush.msra.mxu0 0.0
      %781 = vmatpush.msra.mxu0 0.0
      %782 = vmatpush.msra.mxu0 0.0
      %783 = vmatpush.msra.mxu0 0.0
      %784 = vmatpush.msra.mxu0 0.0
      %785 = vmatpush.msra.mxu0 0.0
      %786 = vmatpush.msra.mxu0 0.0
      %787 = vmatpush.msra.mxu0 %v767
      %788 = vmatmul.f32.gmra.mxu0 %v770
      %v789 = vpop.f32.mrf.mxu0
      %v790 = vadd.f32 0.0, %v789
      %791 = vdwg.mxu0
      %792 = vrot.lane.b32.xlu0 %v575, 48
      %v793 = vpop.permute.xlu0 %792
      %v796 = vsel %vm580, %v738, 0
      %798 = vmatpush.msra.mxu0 0.0
      %799 = vmatpush.msra.mxu0 0.0
      %800 = vmatpush.msra.mxu0 0.0
      %801 = vmatpush.msra.mxu0 0.0
      %802 = vmatpush.msra.mxu0 0.0
      %803 = vmatpush.msra.mxu0 0.0
      %804 = vmatpush.msra.mxu0 0.0
      %805 = vmatpush.msra.mxu0 0.0
      %806 = vmatpush.msra.mxu0 0.0
      %807 = vmatpush.msra.mxu0 0.0
      %808 = vmatpush.msra.mxu0 0.0
      %809 = vmatpush.msra.mxu0 0.0
      %810 = vmatpush.msra.mxu0 0.0
      %811 = vmatpush.msra.mxu0 0.0
      %812 = vmatpush.msra.mxu0 0.0
      %813 = vmatpush.msra.mxu0 %v793
      %814 = vmatmul.f32.gmra.mxu0 %v796
      %v815 = vpop.f32.mrf.mxu0
      %v816 = vadd.f32 0.0, %v815
      %817 = vdwg.mxu0
      %818 = vrot.lane.b32.xlu0 %v575, 40
      %v819 = vpop.permute.xlu0 %818
      %v822 = vsel %vm580, %v739, 0
      %824 = vmatpush.msra.mxu0 0.0
      %825 = vmatpush.msra.mxu0 0.0
      %826 = vmatpush.msra.mxu0 0.0
      %827 = vmatpush.msra.mxu0 0.0
      %828 = vmatpush.msra.mxu0 0.0
      %829 = vmatpush.msra.mxu0 0.0
      %830 = vmatpush.msra.mxu0 0.0
      %831 = vmatpush.msra.mxu0 0.0
      %832 = vmatpush.msra.mxu0 0.0
      %833 = vmatpush.msra.mxu0 0.0
      %834 = vmatpush.msra.mxu0 0.0
      %835 = vmatpush.msra.mxu0 0.0
      %836 = vmatpush.msra.mxu0 0.0
      %837 = vmatpush.msra.mxu0 0.0
      %838 = vmatpush.msra.mxu0 0.0
      %839 = vmatpush.msra.mxu0 %v819
      %840 = vmatmul.f32.gmra.mxu0 %v822
      %v841 = vpop.f32.mrf.mxu0
      %v842 = vadd.f32 0.0, %v841
      %843 = vdwg.mxu0
      %845 = vrot.lane.b32.xlu0 %v790, 8
      %v846 = vpop.permute.xlu0 %845
      %849 = vrot.lane.b32.xlu0 %v816, 16
      %v850 = vpop.permute.xlu0 %849
      %853 = vrot.lane.b32.xlu0 %v842, 24
      %v854 = vpop.permute.xlu0 %853
      %v856 = vsel %vm580, %v764, %v846
      %vm857 = vcmask 130048
      %v858 = vsel %vm857, %v856, %v850
      %vm859 = vcmask 195584
      %v860 = vsel %vm859, %v858, %v854
      %v861 = vld [vmem:[%s6] sm:$0xff]
      %v862 = vld [vmem:[%s6 + $0x8] sm:$0xff]
      %v863 = vld [vmem:[%s6 + $0x10] sm:$0xff]
      %v864 = vld [vmem:[%s6 + $0x18] sm:$0xff]
      %v865 = vld [vmem:[%s10] sm:$0x1]
      %v867 = vperm.slane %v865, 0
      %v870 = vsel %vm512, %v860, 0
      %872 = vmatpush.msra.mxu0 0.0
      %873 = vmatpush.msra.mxu0 0.0
      %874 = vmatpush.msra.mxu0 0.0
      %875 = vmatpush.msra.mxu0 0.0
      %876 = vmatpush.msra.mxu0 0.0
      %877 = vmatpush.msra.mxu0 0.0
      %878 = vmatpush.msra.mxu0 0.0
      %879 = vmatpush.msra.mxu0 0.0
      %880 = vmatpush.msra.mxu0 0.0
      %881 = vmatpush.msra.mxu0 0.0
      %882 = vmatpush.msra.mxu0 0.0
      %883 = vmatpush.msra.mxu0 0.0
      %884 = vmatpush.msra.mxu0 %v864
      %885 = vmatpush.msra.mxu0 %v863
      %886 = vmatpush.msra.mxu0 %v862
      %887 = vmatpush.msra.mxu0 %v861
      %888 = vmatmul.f32.gmra.mxu0 %v870
      %v889 = vpop.f32.mrf.mxu0
      %v890 = vadd.f32 %v867, %v889
      %891 = vdwg.mxu0
      %v892 = vadd.f32 %v508, %v890
      %v893 = vsel %vm512, %v892, 0.0
      %894 = vadd.xlane.f32.xlu0 %v893
      %v895 = vpop.xlane.xlu0 %894
      %v896 = vmul.f32 %v895, %v522
      %v897 = vsub.f32 %v892, %v896
      %v898 = vmul.f32 %v897, %v897
      %v899 = vsel %vm512, %v898, 0.0
      %900 = vadd.xlane.f32.xlu0 %v899
      %v901 = vpop.xlane.xlu0 %900
      %v902 = vmul.f32 %v901, %v522
      %v903 = vadd.f32 %v902, 1e-05
      %v904 = vrsqrt.pop %v903
      %v905 = vmul.f32 %v904, %v903
      %v906 = vmul.f32 %v905, %v904
      %v907 = vmul.f32 0.5, %v906
      %v908 = vsub.f32 1.5, %v907
      %v909 = vmul.f32 %v904, %v908
      %vm910 = vweird.f32 %v903
      %vm911 = vweird.f32 %v904
      %vm912 = vmor %vm910, %vm911
      %v913 = vsel %vm912, %v904, %v909
      %v914 = vmul.f32 %v897, %v913
      %v915 = vperm.slane %v511, 2
      %v916 = vmul.f32 %v914, %v915
      %v917 = vperm.slane %v511, 3
      %v918 = vadd.f32 %v916, %v917
      %v919 = vld [vmem:[%s7] sm:$0xff]
      %v920 = vld [vmem:[%s7 + $0x8] sm:$0xff]
      %v921 = vld [vmem:[%s7 + $0x10] sm:$0xff]
      %v922 = vld [vmem:[%s7 + $0x18] sm:$0xff]
      %v923 = vld [vmem:[%s11] sm:$0x1]
      %v925 = vperm.slane %v923, 0
      %v928 = vsel %vm512, %v918, 0
      %930 = vmatpush.msra.mxu0 0.0
      %931 = vmatpush.msra.mxu0 0.0
      %932 = vmatpush.msra.mxu0 0.0
      %933 = vmatpush.msra.mxu0 0.0
      %934 = vmatpush.msra.mxu0 0.0
      %935 = vmatpush.msra.mxu0 0.0
      %936 = vmatpush.msra.mxu0 0.0
      %937 = vmatpush.msra.mxu0 0.0
      %938 = vmatpush.msra.mxu0 0.0
      %939 = vmatpush.msra.mxu0 0.0
      %940 = vmatpush.msra.mxu0 0.0
      %941 = vmatpush.msra.mxu0 0.0
      %942 = vmatpush.msra.mxu0 %v922
      %943 = vmatpush.msra.mxu0 %v921
      %944 = vmatpush.msra.mxu0 %v920
      %945 = vmatpush.msra.mxu0 %v919
      %946 = vmatmul.f32.gmra.mxu0 %v928
      %v947 = vpop.f32.mrf.mxu0
      %v948 = vadd.f32 %v925, %v947
      %949 = vdwg.mxu0
      %v950 = vmul.f32 %v948, 0.851
      %v951 = vtanh.pop %v950
      %v952 = vadd.f32 %v951, 1.0
      %v953 = vmul.f32 %v952, 0.5
      %v954 = vmul.f32 %v948, %v953
      %v955 = vld [vmem:[%s8] sm:$0xff]
      %v956 = vld [vmem:[%s8 + $0x8] sm:$0xff]
      %v957 = vld [vmem:[%s8 + $0x10] sm:$0xff]
      %v958 = vld [vmem:[%s8 + $0x18] sm:$0xff]
      %v959 = vld [vmem:[%s8 + $0x20] sm:$0xff]
      %v960 = vld [vmem:[%s8 + $0x28] sm:$0xff]
      %v961 = vld [vmem:[%s8 + $0x30] sm:$0xff]
      %v962 = vld [vmem:[%s8 + $0x38] sm:$0xff]
      %v963 = vld [vmem:[%s8 + $0x40] sm:$0xff]
      %v964 = vld [vmem:[%s8 + $0x48] sm:$0xff]
      %v965 = vld [vmem:[%s8 + $0x50] sm:$0xff]
      %v966 = vld [vmem:[%s8 + $0x58] sm:$0xff]
      %v967 = vld [vmem:[%s8 + $0x60] sm:$0xff]
      %v968 = vld [vmem:[%s8 + $0x68] sm:$0xff]
      %v969 = vld [vmem:[%s8 + $0x70] sm:$0xff]
      %v970 = vld [vmem:[%s8 + $0x78] sm:$0xff]
      %v971 = vld [vmem:[%s12] sm:$0x1]
      %v973 = vperm.slane %v971, 0
      %975 = vmatpush.msra.mxu0 %v970
      %976 = vmatpush.msra.mxu0 %v969
      %977 = vmatpush.msra.mxu0 %v968
      %978 = vmatpush.msra.mxu0 %v967
      %979 = vmatpush.msra.mxu0 %v966
      %980 = vmatpush.msra.mxu0 %v965
      %981 = vmatpush.msra.mxu0 %v964
      %982 = vmatpush.msra.mxu0 %v963
      %983 = vmatpush.msra.mxu0 %v962
      %984 = vmatpush.msra.mxu0 %v961
      %985 = vmatpush.msra.mxu0 %v960
      %986 = vmatpush.msra.mxu0 %v959
      %987 = vmatpush.msra.mxu0 %v958
      %988 = vmatpush.msra.mxu0 %v957
      %989 = vmatpush.msra.mxu0 %v956
      %990 = vmatpush.msra.mxu0 %v955
      %991 = vmatmul.f32.gmra.mxu0 %v954
      %v992 = vpop.f32.mrf.mxu0
      %v993 = vadd.f32 %v973, %v992
      %994 = vdwg.mxu0
      %v995 = vadd.f32 %v892, %v993
      %s996 = scalar_lea.vmem %s4, 4
      %v997 = vld [vmem:[%s996] sm:$0xf]
      %v998 = vsel %vm512, %v995, 0.0
      %999 = vadd.xlane.f32.xlu0 %v998
      %v1000 = vpop.xlane.xlu0 %999
      %v1001 = vmul.f32 %v1000, %v522
      %v1002 = vsub.f32 %v995, %v1001
      %v1003 = vmul.f32 %v1002, %v1002
      %v1004 = vsel %vm512, %v1003, 0.0
      %1005 = vadd.xlane.f32.xlu0 %v1004
      %v1006 = vpop.xlane.xlu0 %1005
      %v1007 = vmul.f32 %v1006, %v522
      %v1008 = vadd.f32 %v1007, 1e-05
      %v1009 = vrsqrt.pop %v1008
      %v1010 = vmul.f32 %v1009, %v1008
      %v1011 = vmul.f32 %v1010, %v1009
      %v1012 = vmul.f32 0.5, %v1011
      %v1013 = vsub.f32 1.5, %v1012
      %v1014 = vmul.f32 %v1009, %v1013
      %vm1015 = vweird.f32 %v1008
      %vm1016 = vweird.f32 %v1009
      %vm1017 = vmor %vm1015, %vm1016
      %v1018 = vsel %vm1017, %v1009, %v1014
      %v1019 = vmul.f32 %v1002, %v1018
      %v1020 = vperm.slane %v997, 0
      %v1021 = vmul.f32 %v1019, %v1020
      %v1022 = vperm.slane %v997, 1
      %v1023 = vadd.f32 %v1021, %v1022
      %s1024 = scalar_lea.vmem %s5, 32
      %v1025 = vld [vmem:[%s1024] sm:$0xff]
      %v1026 = vld [vmem:[%s1024 + $0x8] sm:$0xff]
      %v1027 = vld [vmem:[%s1024 + $0x10] sm:$0xff]
      %v1028 = vld [vmem:[%s1024 + $0x18] sm:$0xff]
      %s1029 = scalar_lea.vmem %s9, 1
      %v1030 = vld [vmem:[%s1029] sm:$0x1]
      %v1032 = vperm.slane %v1030, 0
      %v1035 = vsel %vm512, %v1023, 0
      %1037 = vmatpush.msra.mxu0 0.0
      %1038 = vmatpush.msra.mxu0 0.0
      %1039 = vmatpush.msra.mxu0 0.0
      %1040 = vmatpush.msra.mxu0 0.0
      %1041 = vmatpush.msra.mxu0 0.0
      %1042 = vmatpush.msra.mxu0 0.0
      %1043 = vmatpush.msra.mxu0 0.0
      %1044 = vmatpush.msra.mxu0 0.0
      %1045 = vmatpush.msra.mxu0 0.0
      %1046 = vmatpush.msra.mxu0 0.0
      %1047 = vmatpush.msra.mxu0 0.0
      %1048 = vmatpush.msra.mxu0 0.0
      %1049 = vmatpush.msra.mxu0 %v1028
      %1050 = vmatpush.msra.mxu0 %v1027
      %1051 = vmatpush.msra.mxu0 %v1026
      %1052 = vmatpush.msra.mxu0 %v1025
      %1053 = vmatmul.f32.gmra.mxu0 %v1035
      %v1054 = vpop.f32.mrf.mxu0
      %v1055 = vadd.f32 %v1032, %v1054
      %1056 = vdwg.mxu0
      %1058 = vrot.lane.b32.xlu0 %v1055, 96
      %v1059 = vpop.permute.xlu0 %1058
      %v1060 = vsel %vm580, %v1055, 0
      %v1062 = vsel %vm580, %v1059, 0
      %1064 = vmatpush.xpose.msra.mxu0 0.0
      %1065 = vmatpush.xpose.msra.mxu0 0.0
      %1066 = vmatpush.xpose.msra.mxu0 0.0
      %1067 = vmatpush.xpose.msra.mxu0 0.0
      %1068 = vmatpush.xpose.msra.mxu0 0.0
      %1069 = vmatpush.xpose.msra.mxu0 0.0
      %1070 = vmatpush.xpose.msra.mxu0 0.0
      %1071 = vmatpush.xpose.msra.mxu0 0.0
      %1072 = vmatpush.xpose.msra.mxu0 0.0
      %1073 = vmatpush.xpose.msra.mxu0 0.0
      %1074 = vmatpush.xpose.msra.mxu0 0.0
      %1075 = vmatpush.xpose.msra.mxu0 0.0
      %1076 = vmatpush.xpose.msra.mxu0 0.0
      %1077 = vmatpush.xpose.msra.mxu0 0.0
      %1078 = vmatpush.xpose.msra.mxu0 0.0
      %1079 = vmatpush.xpose.msra.mxu0 %v1062
      %1080 = vmatmul.f32.gmra.mxu0 %v1060
      %v1081 = vpop.f32.mrf.mxu0
      %v1082 = vadd.f32 0.0, %v1081
      %1083 = vdwg.mxu0
      %1084 = vrot.lane.b32.xlu0 %v1055, 120
      %v1085 = vpop.permute.xlu0 %1084
      %1086 = vrot.lane.b32.xlu0 %v1055, 88
      %v1087 = vpop.permute.xlu0 %1086
      %v1088 = vsel %vm580, %v1085, 0
      %v1090 = vsel %vm580, %v1087, 0
      %1092 = vmatpush.xpose.msra.mxu0 0.0
      %1093 = vmatpush.xpose.msra.mxu0 0.0
      %1094 = vmatpush.xpose.msra.mxu0 0.0
      %1095 = vmatpush.xpose.msra.mxu0 0.0
      %1096 = vmatpush.xpose.msra.mxu0 0.0
      %1097 = vmatpush.xpose.msra.mxu0 0.0
      %1098 = vmatpush.xpose.msra.mxu0 0.0
      %1099 = vmatpush.xpose.msra.mxu0 0.0
      %1100 = vmatpush.xpose.msra.mxu0 0.0
      %1101 = vmatpush.xpose.msra.mxu0 0.0
      %1102 = vmatpush.xpose.msra.mxu0 0.0
      %1103 = vmatpush.xpose.msra.mxu0 0.0
      %1104 = vmatpush.xpose.msra.mxu0 0.0
      %1105 = vmatpush.xpose.msra.mxu0 0.0
      %1106 = vmatpush.xpose.msra.mxu0 0.0
      %1107 = vmatpush.xpose.msra.mxu0 %v1090
      %1108 = vmatmul.f32.gmra.mxu0 %v1088
      %v1109 = vpop.f32.mrf.mxu0
      %v1110 = vadd.f32 0.0, %v1109
      %1111 = vdwg.mxu0
      %1112 = vrot.lane.b32.xlu0 %v1055, 112
      %v1113 = vpop.permute.xlu0 %1112
      %1114 = vrot.lane.b32.xlu0 %v1055, 80
      %v1115 = vpop.permute.xlu0 %1114
      %v1116 = vsel %vm580, %v1113, 0
      %v1118 = vsel %vm580, %v1115, 0
      %1120 = vmatpush.xpose.msra.mxu0 0.0
      %1121 = vmatpush.xpose.msra.mxu0 0.0
      %1122 = vmatpush.xpose.msra.mxu0 0.0
      %1123 = vmatpush.xpose.msra.mxu0 0.0
      %1124 = vmatpush.xpose.msra.mxu0 0.0
      %1125 = vmatpush.xpose.msra.mxu0 0.0
      %1126 = vmatpush.xpose.msra.mxu0 0.0
      %1127 = vmatpush.xpose.msra.mxu0 0.0
      %1128 = vmatpush.xpose.msra.mxu0 0.0
      %1129 = vmatpush.xpose.msra.mxu0 0.0
      %1130 = vmatpush.xpose.msra.mxu0 0.0
      %1131 = vmatpush.xpose.msra.mxu0 0.0
      %1132 = vmatpush.xpose.msra.mxu0 0.0
      %1133 = vmatpush.xpose.msra.mxu0 0.0
      %1134 = vmatpush.xpose.msra.mxu0 0.0
      %1135 = vmatpush.xpose.msra.mxu0 %v1118
      %1136 = vmatmul.f32.gmra.mxu0 %v1116
      %v1137 = vpop.f32.mrf.mxu0
      %v1138 = vadd.f32 0.0, %v1137
      %1139 = vdwg.mxu0
      %1140 = vrot.lane.b32.xlu0 %v1055, 104
      %v1141 = vpop.permute.xlu0 %1140
      %1142 = vrot.lane.b32.xlu0 %v1055, 72
      %v1143 = vpop.permute.xlu0 %1142
      %v1144 = vsel %vm580, %v1141, 0
      %v1146 = vsel %vm580, %v1143, 0
      %1148 = vmatpush.xpose.msra.mxu0 0.0
      %1149 = vmatpush.xpose.msra.mxu0 0.0
      %1150 = vmatpush.xpose.msra.mxu0 0.0
      %1151 = vmatpush.xpose.msra.mxu0 0.0
      %1152 = vmatpush.xpose.msra.mxu0 0.0
      %1153 = vmatpush.xpose.msra.mxu0 0.0
      %1154 = vmatpush.xpose.msra.mxu0 0.0
      %1155 = vmatpush.xpose.msra.mxu0 0.0
      %1156 = vmatpush.xpose.msra.mxu0 0.0
      %1157 = vmatpush.xpose.msra.mxu0 0.0
      %1158 = vmatpush.xpose.msra.mxu0 0.0
      %1159 = vmatpush.xpose.msra.mxu0 0.0
      %1160 = vmatpush.xpose.msra.mxu0 0.0
      %1161 = vmatpush.xpose.msra.mxu0 0.0
      %1162 = vmatpush.xpose.msra.mxu0 0.0
      %1163 = vmatpush.xpose.msra.mxu0 %v1146
      %1164 = vmatmul.f32.gmra.mxu0 %v1144
      %v1165 = vpop.f32.mrf.mxu0
      %v1166 = vadd.f32 0.0, %v1165
      %1167 = vdwg.mxu0
      %v1168 = vadd.f32 %v1082, %v690
      %v1169 = vadd.f32 %v1110, %v690
      %v1170 = vadd.f32 %v1138, %v690
      %v1171 = vadd.f32 %v1166, %v690
      %v1172 = vsel %vm580, %v1168, -inf
      %1173 = vmax.xlane.f32.xlu0 %v1172
      %v1174 = vpop.xlane.xlu0 %1173
      %v1175 = vsel %vm580, %v1169, -inf
      %1176 = vmax.xlane.f32.xlu0 %v1175
      %v1177 = vpop.xlane.xlu0 %1176
      %v1178 = vsel %vm580, %v1170, -inf
      %1179 = vmax.xlane.f32.xlu0 %v1178
      %v1180 = vpop.xlane.xlu0 %1179
      %v1181 = vsel %vm580, %v1171, -inf
      %1182 = vmax.xlane.f32.xlu0 %v1181
      %v1183 = vpop.xlane.xlu0 %1182
      %v1184 = vsub.f32 %v1168, %v1174
      %v1185 = vsub.f32 %v1169, %v1177
      %v1186 = vsub.f32 %v1170, %v1180
      %v1187 = vsub.f32 %v1171, %v1183
      %v1188 = vmul.f32 %v1184, 1.442695
      %v1189 = vpow.pop %v1188
      %v1190 = vmul.f32 %v1185, 1.442695
      %v1191 = vpow.pop %v1190
      %v1192 = vmul.f32 %v1186, 1.442695
      %v1193 = vpow.pop %v1192
      %v1194 = vmul.f32 %v1187, 1.442695
      %v1195 = vpow.pop %v1194
      %v1196 = vsel %vm580, %v1189, 0.0
      %1197 = vadd.xlane.f32.xlu0 %v1196
      %v1198 = vpop.xlane.xlu0 %1197
      %v1199 = vsel %vm580, %v1191, 0.0
      %1200 = vadd.xlane.f32.xlu0 %v1199
      %v1201 = vpop.xlane.xlu0 %1200
      %v1202 = vsel %vm580, %v1193, 0.0
      %1203 = vadd.xlane.f32.xlu0 %v1202
      %v1204 = vpop.xlane.xlu0 %1203
      %v1205 = vsel %vm580, %v1195, 0.0
      %1206 = vadd.xlane.f32.xlu0 %v1205
      %v1207 = vpop.xlane.xlu0 %1206
      %v1208 = vrcp.pop %v1198
      %v1209 = vrcp.pop %v1201
      %v1210 = vrcp.pop %v1204
      %v1211 = vrcp.pop %v1207
      %v1212 = vmul.f32 %v1189, %v1208
      %v1213 = vmul.f32 %v1191, %v1209
      %v1214 = vmul.f32 %v1193, %v1210
      %v1215 = vmul.f32 %v1195, %v1211
      %1216 = vrot.lane.b32.xlu0 %v1055, 64
      %v1217 = vpop.permute.xlu0 %1216
      %v1220 = vsel %vm580, %v1212, 0
      %1222 = vmatpush.msra.mxu0 0.0
      %1223 = vmatpush.msra.mxu0 0.0
      %1224 = vmatpush.msra.mxu0 0.0
      %1225 = vmatpush.msra.mxu0 0.0
      %1226 = vmatpush.msra.mxu0 0.0
      %1227 = vmatpush.msra.mxu0 0.0
      %1228 = vmatpush.msra.mxu0 0.0
      %1229 = vmatpush.msra.mxu0 0.0
      %1230 = vmatpush.msra.mxu0 0.0
      %1231 = vmatpush.msra.mxu0 0.0
      %1232 = vmatpush.msra.mxu0 0.0
      %1233 = vmatpush.msra.mxu0 0.0
      %1234 = vmatpush.msra.mxu0 0.0
      %1235 = vmatpush.msra.mxu0 0.0
      %1236 = vmatpush.msra.mxu0 0.0
      %1237 = vmatpush.msra.mxu0 %v1217
      %1238 = vmatmul.f32.gmra.mxu0 %v1220
      %v1239 = vpop.f32.mrf.mxu0
      %v1240 = vadd.f32 0.0, %v1239
      %1241 = vdwg.mxu0
      %1242 = vrot.lane.b32.xlu0 %v1055, 56
      %v1243 = vpop.permute.xlu0 %1242
      %v1246 = vsel %vm580, %v1213, 0
      %1248 = vmatpush.msra.mxu0 0.0
      %1249 = vmatpush.msra.mxu0 0.0
      %1250 = vmatpush.msra.mxu0 0.0
      %1251 = vmatpush.msra.mxu0 0.0
      %1252 = vmatpush.msra.mxu0 0.0
      %1253 = vmatpush.msra.mxu0 0.0
      %1254 = vmatpush.msra.mxu0 0.0
      %1255 = vmatpush.msra.mxu0 0.0
      %1256 = vmatpush.msra.mxu0 0.0
      %1257 = vmatpush.msra.mxu0 0.0
      %1258 = vmatpush.msra.mxu0 0.0
      %1259 = vmatpush.msra.mxu0 0.0
      %1260 = vmatpush.msra.mxu0 0.0
      %1261 = vmatpush.msra.mxu0 0.0
      %1262 = vmatpush.msra.mxu0 0.0
      %1263 = vmatpush.msra.mxu0 %v1243
      %1264 = vmatmul.f32.gmra.mxu0 %v1246
      %v1265 = vpop.f32.mrf.mxu0
      %v1266 = vadd.f32 0.0, %v1265
      %1267 = vdwg.mxu0
      %1268 = vrot.lane.b32.xlu0 %v1055, 48
      %v1269 = vpop.permute.xlu0 %1268
      %v1272 = vsel %vm580, %v1214, 0
      %1274 = vmatpush.msra.mxu0 0.0
      %1275 = vmatpush.msra.mxu0 0.0
      %1276 = vmatpush.msra.mxu0 0.0
      %1277 = vmatpush.msra.mxu0 0.0
      %1278 = vmatpush.msra.mxu0 0.0
      %1279 = vmatpush.msra.mxu0 0.0
      %1280 = vmatpush.msra.mxu0 0.0
      %1281 = vmatpush.msra.mxu0 0.0
      %1282 = vmatpush.msra.mxu0 0.0
      %1283 = vmatpush.msra.mxu0 0.0
      %1284 = vmatpush.msra.mxu0 0.0
      %1285 = vmatpush.msra.mxu0 0.0
      %1286 = vmatpush.msra.mxu0 0.0
      %1287 = vmatpush.msra.mxu0 0.0
      %1288 = vmatpush.msra.mxu0 0.0
      %1289 = vmatpush.msra.mxu0 %v1269
      %1290 = vmatmul.f32.gmra.mxu0 %v1272
      %v1291 = vpop.f32.mrf.mxu0
      %v1292 = vadd.f32 0.0, %v1291
      %1293 = vdwg.mxu0
      %1294 = vrot.lane.b32.xlu0 %v1055, 40
      %v1295 = vpop.permute.xlu0 %1294
      %v1298 = vsel %vm580, %v1215, 0
      %1300 = vmatpush.msra.mxu0 0.0
      %1301 = vmatpush.msra.mxu0 0.0
      %1302 = vmatpush.msra.mxu0 0.0
      %1303 = vmatpush.msra.mxu0 0.0
      %1304 = vmatpush.msra.mxu0 0.0
      %1305 = vmatpush.msra.mxu0 0.0
      %1306 = vmatpush.msra.mxu0 0.0
      %1307 = vmatpush.msra.mxu0 0.0
      %1308 = vmatpush.msra.mxu0 0.0
      %1309 = vmatpush.msra.mxu0 0.0
      %1310 = vmatpush.msra.mxu0 0.0
      %1311 = vmatpush.msra.mxu0 0.0
      %1312 = vmatpush.msra.mxu0 0.0
      %1313 = vmatpush.msra.mxu0 0.0
      %1314 = vmatpush.msra.mxu0 0.0
      %1315 = vmatpush.msra.mxu0 %v1295
      %1316 = vmatmul.f32.gmra.mxu0 %v1298
      %v1317 = vpop.f32.mrf.mxu0
      %v1318 = vadd.f32 0.0, %v1317
      %1319 = vdwg.mxu0
      %1321 = vrot.lane.b32.xlu0 %v1266, 8
      %v1322 = vpop.permute.xlu0 %1321
      %1325 = vrot.lane.b32.xlu0 %v1292, 16
      %v1326 = vpop.permute.xlu0 %1325
      %1329 = vrot.lane.b32.xlu0 %v1318, 24
      %v1330 = vpop.permute.xlu0 %1329
      %v1332 = vsel %vm580, %v1240, %v1322
      %v1333 = vsel %vm857, %v1332, %v1326
      %v1334 = vsel %vm859, %v1333, %v1330
      %s1335 = scalar_lea.vmem %s6, 32
      %v1336 = vld [vmem:[%s1335] sm:$0xff]
      %v1337 = vld [vmem:[%s1335 + $0x8] sm:$0xff]
      %v1338 = vld [vmem:[%s1335 + $0x10] sm:$0xff]
      %v1339 = vld [vmem:[%s1335 + $0x18] sm:$0xff]
      %s1340 = scalar_lea.vmem %s10, 1
      %v1341 = vld [vmem:[%s1340] sm:$0x1]
      %v1343 = vperm.slane %v1341, 0
      %v1346 = vsel %vm512, %v1334, 0
      %1348 = vmatpush.msra.mxu0 0.0
      %1349 = vmatpush.msra.mxu0 0.0
      %1350 = vmatpush.msra.mxu0 0.0
      %1351 = vmatpush.msra.mxu0 0.0
      %1352 = vmatpush.msra.mxu0 0.0
      %1353 = vmatpush.msra.mxu0 0.0
      %1354 = vmatpush.msra.mxu0 0.0
      %1355 = vmatpush.msra.mxu0 0.0
      %1356 = vmatpush.msra.mxu0 0.0
      %1357 = vmatpush.msra.mxu0 0.0
      %1358 = vmatpush.msra.mxu0 0.0
      %1359 = vmatpush.msra.mxu0 0.0
      %1360 = vmatpush.msra.mxu0 %v1339
      %1361 = vmatpush.msra.mxu0 %v1338
      %1362 = vmatpush.msra.mxu0 %v1337
      %1363 = vmatpush.msra.mxu0 %v1336
      %1364 = vmatmul.f32.gmra.mxu0 %v1346
      %v1365 = vpop.f32.mrf.mxu0
      %v1366 = vadd.f32 %v1343, %v1365
      %1367 = vdwg.mxu0
      %v1368 = vadd.f32 %v995, %v1366
      %v1369 = vsel %vm512, %v1368, 0.0
      %1370 = vadd.xlane.f32.xlu0 %v1369
      %v1371 = vpop.xlane.xlu0 %1370
      %v1372 = vmul.f32 %v1371, %v522
      %v1373 = vsub.f32 %v1368, %v1372
      %v1374 = vmul.f32 %v1373, %v1373
      %v1375 = vsel %vm512, %v1374, 0.0
      %1376 = vadd.xlane.f32.xlu0 %v1375
      %v1377 = vpop.xlane.xlu0 %1376
      %v1378 = vmul.f32 %v1377, %v522
      %v1379 = vadd.f32 %v1378, 1e-05
      %v1380 = vrsqrt.pop %v1379
      %v1381 = vmul.f32 %v1380, %v1379
      %v1382 = vmul.f32 %v1381, %v1380
      %v1383 = vmul.f32 0.5, %v1382
      %v1384 = vsub.f32 1.5, %v1383
      %v1385 = vmul.f32 %v1380, %v1384
      %vm1386 = vweird.f32 %v1379
      %vm1387 = vweird.f32 %v1380
      %vm1388 = vmor %vm1386, %vm1387
      %v1389 = vsel %vm1388, %v1380, %v1385
      %v1390 = vmul.f32 %v1373, %v1389
      %v1391 = vperm.slane %v997, 2
      %v1392 = vmul.f32 %v1390, %v1391
      %v1393 = vperm.slane %v997, 3
      %v1394 = vadd.f32 %v1392, %v1393
      %s1395 = scalar_lea.vmem %s7, 32
      %v1396 = vld [vmem:[%s1395] sm:$0xff]
      %v1397 = vld [vmem:[%s1395 + $0x8] sm:$0xff]
      %v1398 = vld [vmem:[%s1395 + $0x10] sm:$0xff]
      %v1399 = vld [vmem:[%s1395 + $0x18] sm:$0xff]
      %s1400 = scalar_lea.vmem %s11, 1
      %v1401 = vld [vmem:[%s1400] sm:$0x1]
      %v1403 = vperm.slane %v1401, 0
      %v1406 = vsel %vm512, %v1394, 0
      %1408 = vmatpush.msra.mxu0 0.0
      %1409 = vmatpush.msra.mxu0 0.0
      %1410 = vmatpush.msra.mxu0 0.0
      %1411 = vmatpush.msra.mxu0 0.0
      %1412 = vmatpush.msra.mxu0 0.0
      %1413 = vmatpush.msra.mxu0 0.0
      %1414 = vmatpush.msra.mxu0 0.0
      %1415 = vmatpush.msra.mxu0 0.0
      %1416 = vmatpush.msra.mxu0 0.0
      %1417 = vmatpush.msra.mxu0 0.0
      %1418 = vmatpush.msra.mxu0 0.0
      %1419 = vmatpush.msra.mxu0 0.0
      %1420 = vmatpush.msra.mxu0 %v1399
      %1421 = vmatpush.msra.mxu0 %v1398
      %1422 = vmatpush.msra.mxu0 %v1397
      %1423 = vmatpush.msra.mxu0 %v1396
      %1424 = vmatmul.f32.gmra.mxu0 %v1406
      %v1425 = vpop.f32.mrf.mxu0
      %v1426 = vadd.f32 %v1403, %v1425
      %1427 = vdwg.mxu0
      %v1428 = vmul.f32 %v1426, 0.851
      %v1429 = vtanh.pop %v1428
      %v1430 = vadd.f32 %v1429, 1.0
      %v1431 = vmul.f32 %v1430, 0.5
      %v1432 = vmul.f32 %v1426, %v1431
      %s1433 = scalar_lea.vmem %s8, 128
      %v1434 = vld [vmem:[%s1433] sm:$0xff]
      %v1435 = vld [vmem:[%s1433 + $0x8] sm:$0xff]
      %v1436 = vld [vmem:[%s1433 + $0x10] sm:$0xff]
      %v1437 = vld [vmem:[%s1433 + $0x18] sm:$0xff]
      %v1438 = vld [vmem:[%s1433 + $0x20] sm:$0xff]
      %v1439 = vld [vmem:[%s1433 + $0x28] sm:$0xff]
      %v1440 = vld [vmem:[%s1433 + $0x30] sm:$0xff]
      %v1441 = vld [vmem:[%s1433 + $0x38] sm:$0xff]
      %v1442 = vld [vmem:[%s1433 + $0x40] sm:$0xff]
      %v1443 = vld [vmem:[%s1433 + $0x48] sm:$0xff]
      %v1444 = vld [vmem:[%s1433 + $0x50] sm:$0xff]
      %v1445 = vld [vmem:[%s1433 + $0x58] sm:$0xff]
      %v1446 = vld [vmem:[%s1433 + $0x60] sm:$0xff]
      %v1447 = vld [vmem:[%s1433 + $0x68] sm:$0xff]
      %v1448 = vld [vmem:[%s1433 + $0x70] sm:$0xff]
      %v1449 = vld [vmem:[%s1433 + $0x78] sm:$0xff]
      %s1450 = scalar_lea.vmem %s12, 1
      %v1451 = vld [vmem:[%s1450] sm:$0x1]
      %v1453 = vperm.slane %v1451, 0
      %1455 = vmatpush.msra.mxu0 %v1449
      %1456 = vmatpush.msra.mxu0 %v1448
      %1457 = vmatpush.msra.mxu0 %v1447
      %1458 = vmatpush.msra.mxu0 %v1446
      %1459 = vmatpush.msra.mxu0 %v1445
      %1460 = vmatpush.msra.mxu0 %v1444
      %1461 = vmatpush.msra.mxu0 %v1443
      %1462 = vmatpush.msra.mxu0 %v1442
      %1463 = vmatpush.msra.mxu0 %v1441
      %1464 = vmatpush.msra.mxu0 %v1440
      %1465 = vmatpush.msra.mxu0 %v1439
      %1466 = vmatpush.msra.mxu0 %v1438
      %1467 = vmatpush.msra.mxu0 %v1437
      %1468 = vmatpush.msra.mxu0 %v1436
      %1469 = vmatpush.msra.mxu0 %v1435
      %1470 = vmatpush.msra.mxu0 %v1434
      %1471 = vmatmul.f32.gmra.mxu0 %v1432
      %v1472 = vpop.f32.mrf.mxu0
      %v1473 = vadd.f32 %v1453, %v1472
      %1474 = vdwg.mxu0
      %v1475 = vadd.f32 %v1368, %v1473
      %1476 = vst.msk [vmem:[%s438] sm:$0xff] %vm512, %v1475
      %p1477 = scmp.lt.s32.totalorder %s24, 1
      %s1478 = scalar_select %p1477, %s24, 1
      %s1479 = smul.addr %s1478, 8
      %s1480 = scalar_lea.vmem %s13, %s1479
      // Predicated region
      $region73: #{vit_forward.1} parent=71 // pred_check
        %p1481 = pneg %p320
      $region74: #{vit_forward.1} parent=71 // pred_check_branch
        %1483 = sbr.rel (%p1481) target = $region76
      $region75: #{vit_forward.1} parent=71 // pred_region
        _
      $region76: #{vit_forward.1} parent=71 // pred_fallthru
        _
    $region72: #{vit_forward.1} parent=5 // pred_fallthru
      _
    %p1484 = scmp.le.s32.totalorder 2, %s19
    // Predicated region
    $region77: #{vit_forward.1} parent=5 // pred_check
      %p1485 = pneg %p1484
    $region78: #{vit_forward.1} parent=5 // pred_check_branch
      %1487 = sbr.rel (%p1485) target = $region80
    $region79: #{vit_forward.1} parent=5 // pred_region
      %s1488 = ssub.s32 %s19, 2
      // Predicated region
      $region81: #{vit_forward.1} parent=79 // pred_check
        %p1489 = pneg %p326
      $region82: #{vit_forward.1} parent=79 // pred_check_branch
        %1491 = sbr.rel (%p1489) target = $region84
      $region83: #{vit_forward.1} parent=79 // pred_region
        %p1492 = scmp.lt.s32.totalorder %s25, 1
        %s1493 = scalar_select %p1492, %s25, 1
        %s1494 = smul.addr %s1493, 8
        %s1495 = scalar_lea.vmem %s13, %s1494
      $region84: #{vit_forward.1} parent=79 // pred_fallthru
        _
    $region80: #{vit_forward.1} parent=5 // pred_fallthru
      _
  $region6: #{vit_forward.1} parent=0 // loop_footer
    %s23 = sadd.s32 1, %s19
  $region7: #{vit_forward.1} parent=0 // loop_footer_branch
    %18 = sbr.rel target = $region3
  $region8: #{vit_forward.1} parent=0 // loop_exit
    _

</llo_original>
